<compile_context>
chip_gen: v7x
topology: tpu7x:2x2x1
jax: 0.10.0
libtpu: 0.0.40
codegen_flags: <defaults>
</compile_context>

<pallas_src>
import jax
import jax.numpy as jnp
from jax import lax
from jax.experimental import pallas as pl
from jax.experimental.pallas import tpu as pltpu

# ---- config (mirrors the PyTorch config the module expects) ----
N_VOCAB = 50          # config.n_vocab (last id = padding_idx)
EMB = 32              # config.embedding_size
HID = 32              # config.hidden_size
NUM_LAYERS = 2        # config.num_layers (kernel hard-codes 2 layers)
PAD_SIZE = 8          # config.pad_size == sequence length == maxpool kernel
NUM_CLASSES = 4       # config.num_classes
BATCH = 2

# ---- packed-parameter slab layout (rows x 256 lanes, f32) ----
VPAD = 64                       # vocab padded for the one-hot gather matmul
LANES = 8 * HID                 # 256 = fused gate width [I(2H)|F(2H)|O(2H)|G(2H)]
TAB_R = 0                       # rows [0,64)   : embedding table, cols [:EMB]
WIH_R = TAB_R + VPAD            # rows [64,96)  : W_ih0 scattered into layer0 gate cols
BF_R = WIH_R + EMB              # row 96        : b0 (layer0 cols) + b1 (layer1 cols)
WF_R = BF_R + 8                 # rows [104,168): fused recurrent weight (2H, 8H)
FC_R = WF_R + 2 * HID           # rows [168,232): fc weight (E+H, C) in cols [:C]
FCB_R = FC_R + EMB + HID        # row 232       : fc bias in cols [:C]
SLAB_ROWS = FCB_R + 8           # 240


def model_kernel(tok_ref,       # (L*B, 1) int32, VMEM, time-major (row = t*B + b)
                 slab_ref,      # (SLAB_ROWS, 256) f32, VMEM, packed params
                 out_ref):      # (B, C) f32
    B, L, E, H, C = BATCH, PAD_SIZE, EMB, HID, NUM_CLASSES
    LB = L * B

    # ---- one-hot MXU embedding gather ----
    tok = tok_ref[...]                                              # (L*B, 1) int32
    onehot = (lax.broadcasted_iota(jnp.int32, (LB, VPAD), 1) == tok
              ).astype(jnp.float32)                                 # (L*B, VPAD)
    table = slab_ref[TAB_R:TAB_R + VPAD, :]                         # (VPAD, 256), cols >= E are 0
    embed = jnp.dot(onehot, table,
                    preferred_element_type=jnp.float32)[:, :E]      # (L*B, E)

    # relu∘maxpool of the embedding half of the concat (zeros init == implicit relu)
    max_e = jnp.zeros((B, E), jnp.float32)
    for t in range(L):
        max_e = jnp.maximum(max_e, embed[t * B:(t + 1) * B, :])

    # ---- batched layer-0 input projection (+ layer-1 bias folded into its columns) ----
    wih0p = slab_ref[WIH_R:WIH_R + E, :]                            # (E, 8H)
    bfull = slab_ref[BF_R:BF_R + 1, :]                              # (1, 8H)
    xg = jnp.dot(embed, wih0p, preferred_element_type=jnp.float32) + bfull   # (L*B, 8H)

    # ---- wavefront-fused 2-layer LSTM recurrence ----
    wfused = slab_ref[WF_R:WF_R + 2 * H, :]                         # (2H, 8H)

    def activate(gates, ccat):
        # global gate column order: [i0 i1 | f0 f1 | o0 o1 | g0 g1]
        sig = jax.nn.sigmoid(gates[:, :6 * H])                      # one contiguous sigmoid
        g = jnp.tanh(gates[:, 6 * H:])
        i, f, o = sig[:, :2 * H], sig[:, 2 * H:4 * H], sig[:, 4 * H:]
        c_new = f * ccat + i * g
        h_new = o * jnp.tanh(c_new)
        return h_new, c_new                                         # h_new = [h0 | h1] = next lhs

    zeros_bh = jnp.zeros((B, H), jnp.float32)

    # step 0: layer0 only; both states are zero so no recurrent matmul is needed.
    g0 = xg[0:B, :]
    i0 = jax.nn.sigmoid(g0[:, 0:H])
    o0 = jax.nn.sigmoid(g0[:, 4 * H:5 * H])
    gg0 = jnp.tanh(g0[:, 6 * H:7 * H])
    c0 = i0 * gg0
    h0 = o0 * jnp.tanh(c0)
    hcat = jnp.concatenate([h0, zeros_bh], axis=1)                  # [h0_0 | 0]
    ccat = jnp.concatenate([c0, zeros_bh], axis=1)                  # [c0_0 | 0]

    max_h = jnp.zeros((B, H), jnp.float32)                          # zeros init == implicit relu
    # steps 1..L-1: layer0@t=s and layer1@t=s-1 in one fused matmul (fully unrolled).
    for s in range(1, L):
        gates = xg[s * B:(s + 1) * B, :] + jnp.dot(
            hcat, wfused, preferred_element_type=jnp.float32)
        hcat, ccat = activate(gates, ccat)
        max_h = jnp.maximum(max_h, hcat[:, H:2 * H])                # layer1 output @ t=s-1
    # step L: layer1@t=L-1 only (layer0 half of the update is unused).
    gates = bfull + jnp.dot(hcat, wfused, preferred_element_type=jnp.float32)
    hcat, _ = activate(gates, ccat)
    max_h = jnp.maximum(max_h, hcat[:, H:2 * H])

    # ---- fc + softmax ----
    pooled = jnp.concatenate([max_e, max_h], axis=1)                # (B, E+H)
    fcw = slab_ref[FC_R:FC_R + E + H, :]                            # (E+H, 256), cols >= C are 0
    fcb = slab_ref[FCB_R:FCB_R + 1, :]
    logits = (jnp.dot(pooled, fcw, preferred_element_type=jnp.float32)
              + fcb)[:, :C]                                         # (B, C)
    logits = logits - jnp.max(logits, axis=1, keepdims=True)
    p = jnp.exp(logits)
    out_ref[...] = p * pl.reciprocal(jnp.sum(p, axis=1, keepdims=True), approx=True)


def run_model(tokens, params):
    """tokens: (B, L) int32 token ids."""
    B, L = tokens.shape
    # time-major column: row t*B + b holds tokens[b, t]  (free transpose in the glue)
    tok_col = jnp.transpose(tokens).reshape(L * B, 1).astype(jnp.int32)
    return pl.pallas_call(
        model_kernel,
        out_shape=jax.ShapeDtypeStruct((B, NUM_CLASSES), jnp.float32),
        in_specs=[pl.BlockSpec(memory_space=pltpu.MemorySpace.VMEM),
                  pl.BlockSpec(memory_space=pltpu.MemorySpace.VMEM)],
        out_specs=pl.BlockSpec(memory_space=pltpu.MemorySpace.VMEM),
    )(tok_col, params["slab"])


def init_params(key):
    """Deterministic synthetic parameters matching the nn.Module shapes + packed slab."""
    ks = jax.random.split(key, 11)
    s = 0.1

    def rnd(k, shape):
        return s * jax.random.normal(k, shape, jnp.float32)

    emb = rnd(ks[0], (N_VOCAB, EMB)).at[N_VOCAB - 1].set(0.0)       # padding_idx row -> 0
    # PyTorch LSTM shapes: weight_ih_l{k} (4H,in), weight_hh_l{k} (4H,H), biases (4H,)
    w_ih0 = rnd(ks[1], (4 * HID, EMB)); w_hh0 = rnd(ks[2], (4 * HID, HID))
    b_ih0 = rnd(ks[3], (4 * HID,));     b_hh0 = rnd(ks[4], (4 * HID,))
    w_ih1 = rnd(ks[5], (4 * HID, HID)); w_hh1 = rnd(ks[6], (4 * HID, HID))
    b_ih1 = rnd(ks[7], (4 * HID,));     b_hh1 = rnd(ks[8], (4 * HID,))
    fc_w = rnd(ks[9], (NUM_CLASSES, EMB + HID))
    fc_b = rnd(ks[10], (NUM_CLASSES,))

    raw = dict(embedding=emb,
               w_ih0=w_ih0, w_hh0=w_hh0, b_ih0=b_ih0, b_hh0=b_hh0,
               w_ih1=w_ih1, w_hh1=w_hh1, b_ih1=b_ih1, b_hh1=b_hh1,
               fc_w=fc_w, fc_b=fc_b)

    H = HID

    def scatter(wT, layer):
        """wT (in, 4H) with torch gate-column order [i,f,g,o] -> (in, 8H) placed at the
        fused column order [I(2H)|F(2H)|O(2H)|G(2H)], into the given layer half."""
        i, f, g, o = jnp.split(wT, 4, axis=1)
        parts = []
        for blk in (i, f, o, g):
            pair = [jnp.zeros_like(blk), jnp.zeros_like(blk)]
            pair[layer] = blk
            parts.append(jnp.concatenate(pair, axis=1))
        return jnp.concatenate(parts, axis=1)

    table_blk = jnp.zeros((VPAD, LANES), jnp.float32).at[:N_VOCAB, :EMB].set(emb)
    wih0p_blk = scatter(w_ih0.T, 0)                                           # (EMB, 8H)
    bfull = (scatter((b_ih0 + b_hh0)[None, :], 0)
             + scatter((b_ih1 + b_hh1)[None, :], 1))                          # (1, 8H)
    bfull_blk = jnp.zeros((8, LANES), jnp.float32).at[0:1, :].set(bfull)
    wf_blk = jnp.concatenate([scatter(w_hh0.T, 0) + scatter(w_ih1.T, 1),      # h0 rows
                              scatter(w_hh1.T, 1)], axis=0)                   # h1 rows -> (2H, 8H)
    fc_blk = jnp.zeros((EMB + HID, LANES), jnp.float32).at[:, :NUM_CLASSES].set(fc_w.T)
    fcb_blk = jnp.zeros((8, LANES), jnp.float32).at[0, :NUM_CLASSES].set(fc_b)

    slab = jnp.concatenate([table_blk, wih0p_blk, bfull_blk, wf_blk, fc_blk, fcb_blk],
                           axis=0)
    assert slab.shape == (SLAB_ROWS, LANES)
    return raw, dict(slab=slab)


def reference(tokens, raw):
    """Plain-JAX mirror of the PyTorch forward (eval mode, dropout inactive)."""
    hp = lax.Precision.HIGHEST
    emb = raw["embedding"][tokens]                      # (B, L, E)
    B, L, _ = emb.shape

    def layer(x_seq, w_ih, w_hh, b_ih, b_hh):
        def cell(carry, x_t):
            h, c = carry
            gates = (jnp.dot(x_t, w_ih.T, precision=hp) + b_ih
                     + jnp.dot(h, w_hh.T, precision=hp) + b_hh)
            i, f, g, o = jnp.split(gates, 4, axis=-1)
            c = jax.nn.sigmoid(f) * c + jax.nn.sigmoid(i) * jnp.tanh(g)
            h = jax.nn.sigmoid(o) * jnp.tanh(c)
            return (h, c), h
        init = (jnp.zeros((B, HID), jnp.float32), jnp.zeros((B, HID), jnp.float32))
        _, hs = lax.scan(cell, init, jnp.swapaxes(x_seq, 0, 1))
        return jnp.swapaxes(hs, 0, 1)                   # (B, L, H)

    out1 = layer(emb, raw["w_ih0"], raw["w_hh0"], raw["b_ih0"], raw["b_hh0"])
    out2 = layer(out1, raw["w_ih1"], raw["w_hh1"], raw["b_ih1"], raw["b_hh1"])

    cat = jnp.concatenate([emb, out2], axis=2)          # (B, L, E+H)
    cat = jax.nn.relu(cat)
    pooled = jnp.max(cat, axis=1)                       # MaxPool1d(kernel=L) -> (B, E+H)
    logits = jnp.dot(pooled, raw["fc_w"].T, precision=hp) + raw["fc_b"]
    return jax.nn.softmax(logits, axis=1)


if __name__ == "__main__":
    key = jax.random.PRNGKey(0)
    pkey, tkey = jax.random.split(key)
    raw, params = init_params(pkey)
    tokens = jax.random.randint(tkey, (BATCH, PAD_SIZE), 0, N_VOCAB,
                                dtype=jnp.int32)

    out = run_model(tokens, params)
    jax.block_until_ready(out)

    ref = reference(tokens, raw)
    assert out.shape == (BATCH, NUM_CLASSES)
    assert jnp.allclose(out, ref, atol=2e-3, rtol=2e-3), (out, ref)
    print("KERNEL_OK")
</pallas_src>

<mosaic_0001>
module attributes {stable_mosaic.version = 11 : i64} {
  func.func @model_kernel(%arg0: memref<16x1xi32, #tpu.memory_space<vmem>>, %arg1: memref<240x256xf32, #tpu.memory_space<vmem>>, %arg2: memref<2x4xf32, #tpu.memory_space<vmem>>) attributes {dimension_semantics = [], scalar_prefetch = 0 : i64, scratch_operands = 0 : i64, tpu.core_type = #tpu.core_type<tc>} {
    %c0 = arith.constant 0 : index
    %c0_0 = arith.constant 0 : index
    %0 = vector.load %arg0[%c0, %c0_0] : memref<16x1xi32, #tpu.memory_space<vmem>>, vector<16x1xi32>
    %1 = tpu.iota {dimensions = array<i32: 1>} : vector<16x64xi32>
    %2 = vector.broadcast %0 : vector<16x1xi32> to vector<16x64xi32>
    %3 = arith.cmpi eq, %1, %2 : vector<16x64xi32>
    %4 = arith.extui %3 : vector<16x64xi1> to vector<16x64xi32>
    %5 = arith.sitofp %4 : vector<16x64xi32> to vector<16x64xf32>
    %c0_1 = arith.constant 0 : index
    %c0_2 = arith.constant 0 : index
    %6 = vector.load %arg1[%c0_1, %c0_2] : memref<240x256xf32, #tpu.memory_space<vmem>>, vector<64x256xf32>
    %cst = arith.constant dense<0.000000e+00> : vector<16x256xf32>
    %7 = tpu.matmul %5, %6, %cst {dimension_numbers = #tpu.dot_dimension_numbers<[1], [0], [0], [1], [0, 0, 1, 1], [], []>} : vector<16x64xf32>, vector<64x256xf32>, vector<16x256xf32> -> vector<16x256xf32>
    %8 = vector.extract_strided_slice %7 {offsets = [0, 0], sizes = [16, 32], strides = [1, 1]} : vector<16x256xf32> to vector<16x32xf32>
    %cst_3 = arith.constant 0.000000e+00 : f32
    %9 = vector.broadcast %cst_3 : f32 to vector<2x32xf32>
    %10 = vector.extract_strided_slice %8 {offsets = [0, 0], sizes = [2, 32], strides = [1, 1]} : vector<16x32xf32> to vector<2x32xf32>
    %11 = arith.maximumf %9, %10 : vector<2x32xf32>
    %12 = vector.extract_strided_slice %8 {offsets = [2, 0], sizes = [2, 32], strides = [1, 1]} : vector<16x32xf32> to vector<2x32xf32>
    %13 = arith.maximumf %11, %12 : vector<2x32xf32>
    %14 = vector.extract_strided_slice %8 {offsets = [4, 0], sizes = [2, 32], strides = [1, 1]} : vector<16x32xf32> to vector<2x32xf32>
    %15 = arith.maximumf %13, %14 : vector<2x32xf32>
    %16 = vector.extract_strided_slice %8 {offsets = [6, 0], sizes = [2, 32], strides = [1, 1]} : vector<16x32xf32> to vector<2x32xf32>
    %17 = arith.maximumf %15, %16 : vector<2x32xf32>
    %18 = vector.extract_strided_slice %8 {offsets = [8, 0], sizes = [2, 32], strides = [1, 1]} : vector<16x32xf32> to vector<2x32xf32>
    %19 = arith.maximumf %17, %18 : vector<2x32xf32>
    %20 = vector.extract_strided_slice %8 {offsets = [10, 0], sizes = [2, 32], strides = [1, 1]} : vector<16x32xf32> to vector<2x32xf32>
    %21 = arith.maximumf %19, %20 : vector<2x32xf32>
    %22 = vector.extract_strided_slice %8 {offsets = [12, 0], sizes = [2, 32], strides = [1, 1]} : vector<16x32xf32> to vector<2x32xf32>
    %23 = arith.maximumf %21, %22 : vector<2x32xf32>
    %24 = vector.extract_strided_slice %8 {offsets = [14, 0], sizes = [2, 32], strides = [1, 1]} : vector<16x32xf32> to vector<2x32xf32>
    %25 = arith.maximumf %23, %24 : vector<2x32xf32>
    %c64 = arith.constant 64 : index
    %c0_4 = arith.constant 0 : index
    %26 = vector.load %arg1[%c64, %c0_4] : memref<240x256xf32, #tpu.memory_space<vmem>>, vector<32x256xf32>
    %c96 = arith.constant 96 : index
    %c0_5 = arith.constant 0 : index
    %27 = vector.load %arg1[%c96, %c0_5] : memref<240x256xf32, #tpu.memory_space<vmem>>, vector<1x256xf32>
    %cst_6 = arith.constant dense<0.000000e+00> : vector<16x256xf32>
    %28 = tpu.matmul %8, %26, %cst_6 {dimension_numbers = #tpu.dot_dimension_numbers<[1], [0], [0], [1], [0, 0, 1, 1], [], []>} : vector<16x32xf32>, vector<32x256xf32>, vector<16x256xf32> -> vector<16x256xf32>
    %29 = vector.broadcast %27 : vector<1x256xf32> to vector<16x256xf32>
    %30 = arith.addf %28, %29 : vector<16x256xf32>
    %c104 = arith.constant 104 : index
    %c0_7 = arith.constant 0 : index
    %31 = vector.load %arg1[%c104, %c0_7] : memref<240x256xf32, #tpu.memory_space<vmem>>, vector<64x256xf32>
    %cst_8 = arith.constant 0.000000e+00 : f32
    %32 = vector.broadcast %cst_8 : f32 to vector<2x32xf32>
    %33 = vector.extract_strided_slice %30 {offsets = [0, 0], sizes = [2, 256], strides = [1, 1]} : vector<16x256xf32> to vector<2x256xf32>
    %34 = vector.extract_strided_slice %33 {offsets = [0, 0], sizes = [2, 32], strides = [1, 1]} : vector<2x256xf32> to vector<2x32xf32>
    %35 = arith.negf %34 : vector<2x32xf32>
    %36 = math.exp %35 : vector<2x32xf32>
    %cst_9 = arith.constant 1.000000e+00 : f32
    %37 = vector.broadcast %cst_9 : f32 to vector<2x32xf32>
    %38 = arith.addf %37, %36 : vector<2x32xf32>
    %39 = arith.divf %37, %38 : vector<2x32xf32>
    %40 = vector.extract_strided_slice %33 {offsets = [0, 128], sizes = [2, 32], strides = [1, 1]} : vector<2x256xf32> to vector<2x32xf32>
    %41 = arith.negf %40 : vector<2x32xf32>
    %42 = math.exp %41 : vector<2x32xf32>
    %cst_10 = arith.constant 1.000000e+00 : f32
    %43 = vector.broadcast %cst_10 : f32 to vector<2x32xf32>
    %44 = arith.addf %43, %42 : vector<2x32xf32>
    %45 = arith.divf %43, %44 : vector<2x32xf32>
    %46 = vector.extract_strided_slice %33 {offsets = [0, 192], sizes = [2, 32], strides = [1, 1]} : vector<2x256xf32> to vector<2x32xf32>
    %47 = math.tanh %46 : vector<2x32xf32>
    %48 = arith.mulf %39, %47 : vector<2x32xf32>
    %49 = math.tanh %48 : vector<2x32xf32>
    %50 = arith.mulf %45, %49 : vector<2x32xf32>
    %51 = tpu.concatenate %50, %32 in 1 : vector<2x32xf32>, vector<2x32xf32> -> vector<2x64xf32>
    %52 = tpu.concatenate %48, %32 in 1 : vector<2x32xf32>, vector<2x32xf32> -> vector<2x64xf32>
    %cst_11 = arith.constant 0.000000e+00 : f32
    %53 = vector.broadcast %cst_11 : f32 to vector<2x32xf32>
    %54 = vector.extract_strided_slice %30 {offsets = [2, 0], sizes = [2, 256], strides = [1, 1]} : vector<16x256xf32> to vector<2x256xf32>
    %cst_12 = arith.constant dense<0.000000e+00> : vector<2x256xf32>
    %55 = tpu.matmul %51, %31, %cst_12 {dimension_numbers = #tpu.dot_dimension_numbers<[1], [0], [0], [1], [0, 0, 1, 1], [], []>} : vector<2x64xf32>, vector<64x256xf32>, vector<2x256xf32> -> vector<2x256xf32>
    %56 = arith.addf %54, %55 : vector<2x256xf32>
    %57 = vector.extract_strided_slice %56 {offsets = [0, 0], sizes = [2, 192], strides = [1, 1]} : vector<2x256xf32> to vector<2x192xf32>
    %58 = arith.negf %57 : vector<2x192xf32>
    %59 = math.exp %58 : vector<2x192xf32>
    %cst_13 = arith.constant 1.000000e+00 : f32
    %60 = vector.broadcast %cst_13 : f32 to vector<2x192xf32>
    %61 = arith.addf %60, %59 : vector<2x192xf32>
    %62 = arith.divf %60, %61 : vector<2x192xf32>
    %63 = vector.extract_strided_slice %56 {offsets = [0, 192], sizes = [2, 64], strides = [1, 1]} : vector<2x256xf32> to vector<2x64xf32>
    %64 = math.tanh %63 : vector<2x64xf32>
    %65 = vector.extract_strided_slice %62 {offsets = [0, 0], sizes = [2, 64], strides = [1, 1]} : vector<2x192xf32> to vector<2x64xf32>
    %66 = vector.extract_strided_slice %62 {offsets = [0, 64], sizes = [2, 64], strides = [1, 1]} : vector<2x192xf32> to vector<2x64xf32>
    %67 = vector.extract_strided_slice %62 {offsets = [0, 128], sizes = [2, 64], strides = [1, 1]} : vector<2x192xf32> to vector<2x64xf32>
    %68 = arith.mulf %66, %52 : vector<2x64xf32>
    %69 = arith.mulf %65, %64 : vector<2x64xf32>
    %70 = arith.addf %68, %69 : vector<2x64xf32>
    %71 = math.tanh %70 : vector<2x64xf32>
    %72 = arith.mulf %67, %71 : vector<2x64xf32>
    %73 = vector.extract_strided_slice %72 {offsets = [0, 32], sizes = [2, 32], strides = [1, 1]} : vector<2x64xf32> to vector<2x32xf32>
    %74 = arith.maximumf %53, %73 : vector<2x32xf32>
    %75 = vector.extract_strided_slice %30 {offsets = [4, 0], sizes = [2, 256], strides = [1, 1]} : vector<16x256xf32> to vector<2x256xf32>
    %cst_14 = arith.constant dense<0.000000e+00> : vector<2x256xf32>
    %76 = tpu.matmul %72, %31, %cst_14 {dimension_numbers = #tpu.dot_dimension_numbers<[1], [0], [0], [1], [0, 0, 1, 1], [], []>} : vector<2x64xf32>, vector<64x256xf32>, vector<2x256xf32> -> vector<2x256xf32>
    %77 = arith.addf %75, %76 : vector<2x256xf32>
    %78 = vector.extract_strided_slice %77 {offsets = [0, 0], sizes = [2, 192], strides = [1, 1]} : vector<2x256xf32> to vector<2x192xf32>
    %79 = arith.negf %78 : vector<2x192xf32>
    %80 = math.exp %79 : vector<2x192xf32>
    %cst_15 = arith.constant 1.000000e+00 : f32
    %81 = vector.broadcast %cst_15 : f32 to vector<2x192xf32>
    %82 = arith.addf %81, %80 : vector<2x192xf32>
    %83 = arith.divf %81, %82 : vector<2x192xf32>
    %84 = vector.extract_strided_slice %77 {offsets = [0, 192], sizes = [2, 64], strides = [1, 1]} : vector<2x256xf32> to vector<2x64xf32>
    %85 = math.tanh %84 : vector<2x64xf32>
    %86 = vector.extract_strided_slice %83 {offsets = [0, 0], sizes = [2, 64], strides = [1, 1]} : vector<2x192xf32> to vector<2x64xf32>
    %87 = vector.extract_strided_slice %83 {offsets = [0, 64], sizes = [2, 64], strides = [1, 1]} : vector<2x192xf32> to vector<2x64xf32>
    %88 = vector.extract_strided_slice %83 {offsets = [0, 128], sizes = [2, 64], strides = [1, 1]} : vector<2x192xf32> to vector<2x64xf32>
    %89 = arith.mulf %87, %70 : vector<2x64xf32>
    %90 = arith.mulf %86, %85 : vector<2x64xf32>
    %91 = arith.addf %89, %90 : vector<2x64xf32>
    %92 = math.tanh %91 : vector<2x64xf32>
    %93 = arith.mulf %88, %92 : vector<2x64xf32>
    %94 = vector.extract_strided_slice %93 {offsets = [0, 32], sizes = [2, 32], strides = [1, 1]} : vector<2x64xf32> to vector<2x32xf32>
    %95 = arith.maximumf %74, %94 : vector<2x32xf32>
    %96 = vector.extract_strided_slice %30 {offsets = [6, 0], sizes = [2, 256], strides = [1, 1]} : vector<16x256xf32> to vector<2x256xf32>
    %cst_16 = arith.constant dense<0.000000e+00> : vector<2x256xf32>
    %97 = tpu.matmul %93, %31, %cst_16 {dimension_numbers = #tpu.dot_dimension_numbers<[1], [0], [0], [1], [0, 0, 1, 1], [], []>} : vector<2x64xf32>, vector<64x256xf32>, vector<2x256xf32> -> vector<2x256xf32>
    %98 = arith.addf %96, %97 : vector<2x256xf32>
    %99 = vector.extract_strided_slice %98 {offsets = [0, 0], sizes = [2, 192], strides = [1, 1]} : vector<2x256xf32> to vector<2x192xf32>
    %100 = arith.negf %99 : vector<2x192xf32>
    %101 = math.exp %100 : vector<2x192xf32>
    %cst_17 = arith.constant 1.000000e+00 : f32
    %102 = vector.broadcast %cst_17 : f32 to vector<2x192xf32>
    %103 = arith.addf %102, %101 : vector<2x192xf32>
    %104 = arith.divf %102, %103 : vector<2x192xf32>
    %105 = vector.extract_strided_slice %98 {offsets = [0, 192], sizes = [2, 64], strides = [1, 1]} : vector<2x256xf32> to vector<2x64xf32>
    %106 = math.tanh %105 : vector<2x64xf32>
    %107 = vector.extract_strided_slice %104 {offsets = [0, 0], sizes = [2, 64], strides = [1, 1]} : vector<2x192xf32> to vector<2x64xf32>
    %108 = vector.extract_strided_slice %104 {offsets = [0, 64], sizes = [2, 64], strides = [1, 1]} : vector<2x192xf32> to vector<2x64xf32>
    %109 = vector.extract_strided_slice %104 {offsets = [0, 128], sizes = [2, 64], strides = [1, 1]} : vector<2x192xf32> to vector<2x64xf32>
    %110 = arith.mulf %108, %91 : vector<2x64xf32>
    %111 = arith.mulf %107, %106 : vector<2x64xf32>
    %112 = arith.addf %110, %111 : vector<2x64xf32>
    %113 = math.tanh %112 : vector<2x64xf32>
    %114 = arith.mulf %109, %113 : vector<2x64xf32>
    %115 = vector.extract_strided_slice %114 {offsets = [0, 32], sizes = [2, 32], strides = [1, 1]} : vector<2x64xf32> to vector<2x32xf32>
    %116 = arith.maximumf %95, %115 : vector<2x32xf32>
    %117 = vector.extract_strided_slice %30 {offsets = [8, 0], sizes = [2, 256], strides = [1, 1]} : vector<16x256xf32> to vector<2x256xf32>
    %cst_18 = arith.constant dense<0.000000e+00> : vector<2x256xf32>
    %118 = tpu.matmul %114, %31, %cst_18 {dimension_numbers = #tpu.dot_dimension_numbers<[1], [0], [0], [1], [0, 0, 1, 1], [], []>} : vector<2x64xf32>, vector<64x256xf32>, vector<2x256xf32> -> vector<2x256xf32>
    %119 = arith.addf %117, %118 : vector<2x256xf32>
    %120 = vector.extract_strided_slice %119 {offsets = [0, 0], sizes = [2, 192], strides = [1, 1]} : vector<2x256xf32> to vector<2x192xf32>
    %121 = arith.negf %120 : vector<2x192xf32>
    %122 = math.exp %121 : vector<2x192xf32>
    %cst_19 = arith.constant 1.000000e+00 : f32
    %123 = vector.broadcast %cst_19 : f32 to vector<2x192xf32>
    %124 = arith.addf %123, %122 : vector<2x192xf32>
    %125 = arith.divf %123, %124 : vector<2x192xf32>
    %126 = vector.extract_strided_slice %119 {offsets = [0, 192], sizes = [2, 64], strides = [1, 1]} : vector<2x256xf32> to vector<2x64xf32>
    %127 = math.tanh %126 : vector<2x64xf32>
    %128 = vector.extract_strided_slice %125 {offsets = [0, 0], sizes = [2, 64], strides = [1, 1]} : vector<2x192xf32> to vector<2x64xf32>
    %129 = vector.extract_strided_slice %125 {offsets = [0, 64], sizes = [2, 64], strides = [1, 1]} : vector<2x192xf32> to vector<2x64xf32>
    %130 = vector.extract_strided_slice %125 {offsets = [0, 128], sizes = [2, 64], strides = [1, 1]} : vector<2x192xf32> to vector<2x64xf32>
    %131 = arith.mulf %129, %112 : vector<2x64xf32>
    %132 = arith.mulf %128, %127 : vector<2x64xf32>
    %133 = arith.addf %131, %132 : vector<2x64xf32>
    %134 = math.tanh %133 : vector<2x64xf32>
    %135 = arith.mulf %130, %134 : vector<2x64xf32>
    %136 = vector.extract_strided_slice %135 {offsets = [0, 32], sizes = [2, 32], strides = [1, 1]} : vector<2x64xf32> to vector<2x32xf32>
    %137 = arith.maximumf %116, %136 : vector<2x32xf32>
    %138 = vector.extract_strided_slice %30 {offsets = [10, 0], sizes = [2, 256], strides = [1, 1]} : vector<16x256xf32> to vector<2x256xf32>
    %cst_20 = arith.constant dense<0.000000e+00> : vector<2x256xf32>
    %139 = tpu.matmul %135, %31, %cst_20 {dimension_numbers = #tpu.dot_dimension_numbers<[1], [0], [0], [1], [0, 0, 1, 1], [], []>} : vector<2x64xf32>, vector<64x256xf32>, vector<2x256xf32> -> vector<2x256xf32>
    %140 = arith.addf %138, %139 : vector<2x256xf32>
    %141 = vector.extract_strided_slice %140 {offsets = [0, 0], sizes = [2, 192], strides = [1, 1]} : vector<2x256xf32> to vector<2x192xf32>
    %142 = arith.negf %141 : vector<2x192xf32>
    %143 = math.exp %142 : vector<2x192xf32>
    %cst_21 = arith.constant 1.000000e+00 : f32
    %144 = vector.broadcast %cst_21 : f32 to vector<2x192xf32>
    %145 = arith.addf %144, %143 : vector<2x192xf32>
    %146 = arith.divf %144, %145 : vector<2x192xf32>
    %147 = vector.extract_strided_slice %140 {offsets = [0, 192], sizes = [2, 64], strides = [1, 1]} : vector<2x256xf32> to vector<2x64xf32>
    %148 = math.tanh %147 : vector<2x64xf32>
    %149 = vector.extract_strided_slice %146 {offsets = [0, 0], sizes = [2, 64], strides = [1, 1]} : vector<2x192xf32> to vector<2x64xf32>
    %150 = vector.extract_strided_slice %146 {offsets = [0, 64], sizes = [2, 64], strides = [1, 1]} : vector<2x192xf32> to vector<2x64xf32>
    %151 = vector.extract_strided_slice %146 {offsets = [0, 128], sizes = [2, 64], strides = [1, 1]} : vector<2x192xf32> to vector<2x64xf32>
    %152 = arith.mulf %150, %133 : vector<2x64xf32>
    %153 = arith.mulf %149, %148 : vector<2x64xf32>
    %154 = arith.addf %152, %153 : vector<2x64xf32>
    %155 = math.tanh %154 : vector<2x64xf32>
    %156 = arith.mulf %151, %155 : vector<2x64xf32>
    %157 = vector.extract_strided_slice %156 {offsets = [0, 32], sizes = [2, 32], strides = [1, 1]} : vector<2x64xf32> to vector<2x32xf32>
    %158 = arith.maximumf %137, %157 : vector<2x32xf32>
    %159 = vector.extract_strided_slice %30 {offsets = [12, 0], sizes = [2, 256], strides = [1, 1]} : vector<16x256xf32> to vector<2x256xf32>
    %cst_22 = arith.constant dense<0.000000e+00> : vector<2x256xf32>
    %160 = tpu.matmul %156, %31, %cst_22 {dimension_numbers = #tpu.dot_dimension_numbers<[1], [0], [0], [1], [0, 0, 1, 1], [], []>} : vector<2x64xf32>, vector<64x256xf32>, vector<2x256xf32> -> vector<2x256xf32>
    %161 = arith.addf %159, %160 : vector<2x256xf32>
    %162 = vector.extract_strided_slice %161 {offsets = [0, 0], sizes = [2, 192], strides = [1, 1]} : vector<2x256xf32> to vector<2x192xf32>
    %163 = arith.negf %162 : vector<2x192xf32>
    %164 = math.exp %163 : vector<2x192xf32>
    %cst_23 = arith.constant 1.000000e+00 : f32
    %165 = vector.broadcast %cst_23 : f32 to vector<2x192xf32>
    %166 = arith.addf %165, %164 : vector<2x192xf32>
    %167 = arith.divf %165, %166 : vector<2x192xf32>
    %168 = vector.extract_strided_slice %161 {offsets = [0, 192], sizes = [2, 64], strides = [1, 1]} : vector<2x256xf32> to vector<2x64xf32>
    %169 = math.tanh %168 : vector<2x64xf32>
    %170 = vector.extract_strided_slice %167 {offsets = [0, 0], sizes = [2, 64], strides = [1, 1]} : vector<2x192xf32> to vector<2x64xf32>
    %171 = vector.extract_strided_slice %167 {offsets = [0, 64], sizes = [2, 64], strides = [1, 1]} : vector<2x192xf32> to vector<2x64xf32>
    %172 = vector.extract_strided_slice %167 {offsets = [0, 128], sizes = [2, 64], strides = [1, 1]} : vector<2x192xf32> to vector<2x64xf32>
    %173 = arith.mulf %171, %154 : vector<2x64xf32>
    %174 = arith.mulf %170, %169 : vector<2x64xf32>
    %175 = arith.addf %173, %174 : vector<2x64xf32>
    %176 = math.tanh %175 : vector<2x64xf32>
    %177 = arith.mulf %172, %176 : vector<2x64xf32>
    %178 = vector.extract_strided_slice %177 {offsets = [0, 32], sizes = [2, 32], strides = [1, 1]} : vector<2x64xf32> to vector<2x32xf32>
    %179 = arith.maximumf %158, %178 : vector<2x32xf32>
    %180 = vector.extract_strided_slice %30 {offsets = [14, 0], sizes = [2, 256], strides = [1, 1]} : vector<16x256xf32> to vector<2x256xf32>
    %cst_24 = arith.constant dense<0.000000e+00> : vector<2x256xf32>
    %181 = tpu.matmul %177, %31, %cst_24 {dimension_numbers = #tpu.dot_dimension_numbers<[1], [0], [0], [1], [0, 0, 1, 1], [], []>} : vector<2x64xf32>, vector<64x256xf32>, vector<2x256xf32> -> vector<2x256xf32>
    %182 = arith.addf %180, %181 : vector<2x256xf32>
    %183 = vector.extract_strided_slice %182 {offsets = [0, 0], sizes = [2, 192], strides = [1, 1]} : vector<2x256xf32> to vector<2x192xf32>
    %184 = arith.negf %183 : vector<2x192xf32>
    %185 = math.exp %184 : vector<2x192xf32>
    %cst_25 = arith.constant 1.000000e+00 : f32
    %186 = vector.broadcast %cst_25 : f32 to vector<2x192xf32>
    %187 = arith.addf %186, %185 : vector<2x192xf32>
    %188 = arith.divf %186, %187 : vector<2x192xf32>
    %189 = vector.extract_strided_slice %182 {offsets = [0, 192], sizes = [2, 64], strides = [1, 1]} : vector<2x256xf32> to vector<2x64xf32>
    %190 = math.tanh %189 : vector<2x64xf32>
    %191 = vector.extract_strided_slice %188 {offsets = [0, 0], sizes = [2, 64], strides = [1, 1]} : vector<2x192xf32> to vector<2x64xf32>
    %192 = vector.extract_strided_slice %188 {offsets = [0, 64], sizes = [2, 64], strides = [1, 1]} : vector<2x192xf32> to vector<2x64xf32>
    %193 = vector.extract_strided_slice %188 {offsets = [0, 128], sizes = [2, 64], strides = [1, 1]} : vector<2x192xf32> to vector<2x64xf32>
    %194 = arith.mulf %192, %175 : vector<2x64xf32>
    %195 = arith.mulf %191, %190 : vector<2x64xf32>
    %196 = arith.addf %194, %195 : vector<2x64xf32>
    %197 = math.tanh %196 : vector<2x64xf32>
    %198 = arith.mulf %193, %197 : vector<2x64xf32>
    %199 = vector.extract_strided_slice %198 {offsets = [0, 32], sizes = [2, 32], strides = [1, 1]} : vector<2x64xf32> to vector<2x32xf32>
    %200 = arith.maximumf %179, %199 : vector<2x32xf32>
    %cst_26 = arith.constant dense<0.000000e+00> : vector<2x256xf32>
    %201 = tpu.matmul %198, %31, %cst_26 {dimension_numbers = #tpu.dot_dimension_numbers<[1], [0], [0], [1], [0, 0, 1, 1], [], []>} : vector<2x64xf32>, vector<64x256xf32>, vector<2x256xf32> -> vector<2x256xf32>
    %202 = vector.broadcast %27 : vector<1x256xf32> to vector<2x256xf32>
    %203 = arith.addf %202, %201 : vector<2x256xf32>
    %204 = vector.extract_strided_slice %203 {offsets = [0, 0], sizes = [2, 192], strides = [1, 1]} : vector<2x256xf32> to vector<2x192xf32>
    %205 = arith.negf %204 : vector<2x192xf32>
    %206 = math.exp %205 : vector<2x192xf32>
    %cst_27 = arith.constant 1.000000e+00 : f32
    %207 = vector.broadcast %cst_27 : f32 to vector<2x192xf32>
    %208 = arith.addf %207, %206 : vector<2x192xf32>
    %209 = arith.divf %207, %208 : vector<2x192xf32>
    %210 = vector.extract_strided_slice %203 {offsets = [0, 192], sizes = [2, 64], strides = [1, 1]} : vector<2x256xf32> to vector<2x64xf32>
    %211 = math.tanh %210 : vector<2x64xf32>
    %212 = vector.extract_strided_slice %209 {offsets = [0, 0], sizes = [2, 64], strides = [1, 1]} : vector<2x192xf32> to vector<2x64xf32>
    %213 = vector.extract_strided_slice %209 {offsets = [0, 64], sizes = [2, 64], strides = [1, 1]} : vector<2x192xf32> to vector<2x64xf32>
    %214 = vector.extract_strided_slice %209 {offsets = [0, 128], sizes = [2, 64], strides = [1, 1]} : vector<2x192xf32> to vector<2x64xf32>
    %215 = arith.mulf %213, %196 : vector<2x64xf32>
    %216 = arith.mulf %212, %211 : vector<2x64xf32>
    %217 = arith.addf %215, %216 : vector<2x64xf32>
    %218 = math.tanh %217 : vector<2x64xf32>
    %219 = arith.mulf %214, %218 : vector<2x64xf32>
    %220 = vector.extract_strided_slice %219 {offsets = [0, 32], sizes = [2, 32], strides = [1, 1]} : vector<2x64xf32> to vector<2x32xf32>
    %221 = arith.maximumf %200, %220 : vector<2x32xf32>
    %222 = tpu.concatenate %25, %221 in 1 : vector<2x32xf32>, vector<2x32xf32> -> vector<2x64xf32>
    %c168 = arith.constant 168 : index
    %c0_28 = arith.constant 0 : index
    %223 = vector.load %arg1[%c168, %c0_28] : memref<240x256xf32, #tpu.memory_space<vmem>>, vector<64x256xf32>
    %c232 = arith.constant 232 : index
    %c0_29 = arith.constant 0 : index
    %224 = vector.load %arg1[%c232, %c0_29] : memref<240x256xf32, #tpu.memory_space<vmem>>, vector<1x256xf32>
    %cst_30 = arith.constant dense<0.000000e+00> : vector<2x256xf32>
    %225 = tpu.matmul %222, %223, %cst_30 {dimension_numbers = #tpu.dot_dimension_numbers<[1], [0], [0], [1], [0, 0, 1, 1], [], []>} : vector<2x64xf32>, vector<64x256xf32>, vector<2x256xf32> -> vector<2x256xf32>
    %226 = vector.broadcast %224 : vector<1x256xf32> to vector<2x256xf32>
    %227 = arith.addf %225, %226 : vector<2x256xf32>
    %228 = vector.extract_strided_slice %227 {offsets = [0, 0], sizes = [2, 4], strides = [1, 1]} : vector<2x256xf32> to vector<2x4xf32>
    %cst_31 = arith.constant dense<0xFF800000> : vector<2xf32>
    %229 = vector.multi_reduction <maximumf>, %228, %cst_31 [1] : vector<2x4xf32> to vector<2xf32>
    %230 = vector.shape_cast %229 : vector<2xf32> to vector<2x1xf32>
    %231 = vector.broadcast %230 : vector<2x1xf32> to vector<2x4xf32>
    %232 = arith.subf %228, %231 : vector<2x4xf32>
    %233 = math.exp %232 : vector<2x4xf32>
    %cst_32 = arith.constant dense<0.000000e+00> : vector<2xf32>
    %234 = vector.multi_reduction <add>, %233, %cst_32 [1] : vector<2x4xf32> to vector<2xf32>
    %235 = vector.shape_cast %234 : vector<2xf32> to vector<2x1xf32>
    %236 = tpu.reciprocal %235 {approx = true} : vector<2x1xf32> -> vector<2x1xf32>
    %237 = vector.broadcast %236 : vector<2x1xf32> to vector<2x4xf32>
    %238 = arith.mulf %233, %237 : vector<2x4xf32>
    %c0_33 = arith.constant 0 : index
    %c0_34 = arith.constant 0 : index
    %239 = vector.load %arg2[%c0_33, %c0_34] : memref<2x4xf32, #tpu.memory_space<vmem>>, vector<2x4xf32>
    tpu.vector_store %arg2[%c0_33, %c0_34], %238 {strides = array<i32>} : memref<2x4xf32, #tpu.memory_space<vmem>>, vector<2x4xf32>,
    return
  }
}

</mosaic_0001>

<llo_original>
// kernel: tpu_custom_call.1
$region0: #{tpu_custom_call.1}
  #allocation0 [shape = 'u32[]', space=smem, size = 0x4, offset = 0x4, fixed_abs, tag = 'smem constant byte address 0x4 - core index']
  #allocation1 [shape = 'u32[144,128]{1,0:T(1,128)}', space=vmem, size = 0x12000, scoped, tag = 'internal scratch']
  %s0 = inlined_call_operand.vmem [shape: s32[16,1], index: 0, kind: input, shape index: {}]
  %s1 = inlined_call_operand.hbm [shape: f32[240,256], index: 1, kind: input, shape index: {}]
  %s2 = inlined_call_operand.hbm [shape: f32[2,4], index: 2, kind: output, shape index: {}]
  %s3 = sld [smem:[#allocation0]]
  $region22: #{tpu_custom_call.1} parent=0
    _
  %s5 = ssub.s32 1, %s3
  %s6 = scalar_select 0, %s5, %s3
  $region1: #{tpu_custom_call.1} parent=0
    #allocation2 [shape = 'u8[245760]{0}', space=vmem, size = 0x3c000, scoped, tag = 'input window, operand 1, single buffered']
    #allocation3 [shape = 's32[1]{0}', space=sflag, size = 0x4, scoped, tag = 'scoped memory for tpu_custom_call.1']
    #allocation4 [shape = 's32[1]{0}', space=sflag, size = 0x4, scoped, tag = 'scoped memory for tpu_custom_call.1']
    #allocation5 [shape = 'u8[1024]{0}', space=vmem, size = 0x400, scoped, tag = 'output window, operand 0, single buffered']
    %7 = vsyncpa [#allocation3], 0
    %8 = vsyncpa [#allocation4], 0
    // Predicated region
    $region2: #{tpu_custom_call.1} parent=1 // pred_check
      _
    $region3: #{tpu_custom_call.1} parent=1 // pred_check_branch
      %10 = sbr.rel (0) target = $region5
    $region4: #{tpu_custom_call.1} parent=1 // pred_region
      _
    $region5: #{tpu_custom_call.1} parent=1 // pred_fallthru
      _
    // Predicated region
    $region6: #{tpu_custom_call.1} parent=1 // pred_check
      _
    $region7: #{tpu_custom_call.1} parent=1 // pred_check_branch
      %12 = sbr.rel (0) target = $region9
    $region8: #{tpu_custom_call.1} parent=1 // pred_region
      %s14 = ssub.s32 7680, 7680
      %15 = vsyncadd [#allocation3], %s14
      %s16 = sshll.u32 [#allocation2], 4
      %s17 = int_to_ptr.vmem [resolvable:$true] %s16
      %22 = dma.hbm_to_vmem [thread:$0]  %s1, 7680, %s17, [#allocation3], 256, 256, 16
    $region9: #{tpu_custom_call.1} parent=1 // pred_fallthru
      _
    // Predicated region
    $region10: #{tpu_custom_call.1} parent=1 // pred_check
      _
    $region11: #{tpu_custom_call.1} parent=1 // pred_check_branch
      %24 = sbr.rel (0) target = $region13
    $region12: #{tpu_custom_call.1} parent=1 // pred_region
      %25 = dma.done [#allocation3], 7680
    $region13: #{tpu_custom_call.1} parent=1 // pred_fallthru
      _
    %v26 = vld [vmem:[%s0] sm:$0xff]
    %v27 = vld [vmem:[%s0 + $0x8] sm:$0xff]
    %v28 = vlaneseq
    %v29 = vand.u32 %v28, 127
    %30 = vset.pattern.permute.xlu0 0
    %31 = vperm.xlu0 %30, %v26
    %v32 = vpop.permute.xlu0 %31
    %33 = vset.pattern.permute.xlu0 0
    %34 = vperm.xlu0 %33, %v27
    %v35 = vpop.permute.xlu0 %34
    %vm36 = vcmp.eq.s32.totalorder %v29, %v32
    %vm37 = vcmp.eq.s32.totalorder %v29, %v35
    %v38 = vsel %vm36, 1, 0
    %v39 = vsel %vm37, 1, 0
    %v40 = vcvt.s32.f32 %v38
    %v41 = vcvt.s32.f32 %v39
    %v42 = vld [vmem:[#allocation2] sm:$0xff]
    %v43 = vld [vmem:[#allocation2 + $0x8] sm:$0xff]
    %v44 = vld [vmem:[#allocation2 + $0x10] sm:$0xff]
    %v45 = vld [vmem:[#allocation2 + $0x18] sm:$0xff]
    %v46 = vld [vmem:[#allocation2 + $0x20] sm:$0xff]
    %v47 = vld [vmem:[#allocation2 + $0x28] sm:$0xff]
    %v48 = vld [vmem:[#allocation2 + $0x30] sm:$0xff]
    %v49 = vld [vmem:[#allocation2 + $0x38] sm:$0xff]
    %v50 = vld [vmem:[#allocation2 + $0x40] sm:$0xff]
    %v51 = vld [vmem:[#allocation2 + $0x48] sm:$0xff]
    %v52 = vld [vmem:[#allocation2 + $0x50] sm:$0xff]
    %v53 = vld [vmem:[#allocation2 + $0x58] sm:$0xff]
    %v54 = vld [vmem:[#allocation2 + $0x60] sm:$0xff]
    %v55 = vld [vmem:[#allocation2 + $0x68] sm:$0xff]
    %v56 = vld [vmem:[#allocation2 + $0x70] sm:$0xff]
    %v57 = vld [vmem:[#allocation2 + $0x78] sm:$0xff]
    %vm58 = vcmask 523264
    %v60 = vsel %vm58, %v40, 0
    %v63 = vsel %vm58, %v41, 0
    %65 = vmatprep.subr.mxu0 %v43
    %66 = vmatpush1.msra.mxu0 %v42
    %67 = vmatprep.subr.mxu0 %v45
    %68 = vmatpush1.msra.mxu0 %v44
    %69 = vmatprep.subr.mxu0 %v47
    %70 = vmatpush1.msra.mxu0 %v46
    %71 = vmatprep.subr.mxu0 %v49
    %72 = vmatpush1.msra.mxu0 %v48
    %73 = vmatprep.subr.mxu0 %v51
    %74 = vmatpush1.msra.mxu0 %v50
    %75 = vmatprep.subr.mxu0 %v53
    %76 = vmatpush1.msra.mxu0 %v52
    %77 = vmatprep.subr.mxu0 %v55
    %78 = vmatpush1.msra.mxu0 %v54
    %79 = vmatprep.subr.mxu0 %v57
    %80 = vmatpush1.msra.mxu0 %v56
    %81 = vmatprep.subr.mxu0 0.0
    %82 = vmatpush1.msra.mxu0 0.0
    %83 = vmatprep.subr.mxu0 0.0
    %84 = vmatpush1.msra.mxu0 0.0
    %85 = vmatprep.subr.mxu0 0.0
    %86 = vmatpush1.msra.mxu0 0.0
    %87 = vmatprep.subr.mxu0 0.0
    %88 = vmatpush1.msra.mxu0 0.0
    %89 = vmatprep.subr.mxu0 0.0
    %90 = vmatpush1.msra.mxu0 0.0
    %91 = vmatprep.subr.mxu0 0.0
    %92 = vmatpush1.msra.mxu0 0.0
    %93 = vmatprep.subr.mxu0 0.0
    %94 = vmatpush1.msra.mxu0 0.0
    %95 = vmatprep.subr.mxu0 0.0
    %96 = vmatpush1.msra.mxu0 0.0
    %97 = vmatprep.subr.mxu0 0.0
    %98 = vmatpush1.msra.mxu0 0.0
    %99 = vmatprep.subr.mxu0 0.0
    %100 = vmatpush1.msra.mxu0 0.0
    %101 = vmatprep.subr.mxu0 0.0
    %102 = vmatpush1.msra.mxu0 0.0
    %103 = vmatprep.subr.mxu0 0.0
    %104 = vmatpush1.msra.mxu0 0.0
    %105 = vmatprep.subr.mxu0 0.0
    %106 = vmatpush1.msra.mxu0 0.0
    %107 = vmatprep.subr.mxu0 0.0
    %108 = vmatpush1.msra.mxu0 0.0
    %109 = vmatprep.subr.mxu0 0.0
    %110 = vmatpush1.msra.mxu0 0.0
    %111 = vmatprep.subr.mxu0 0.0
    %112 = vmatpush1.msra.mxu0 0.0
    %113 = vmatprep.subr.mxu0 0.0
    %114 = vmatpush1.msra.mxu0 0.0
    %115 = vmatprep.subr.mxu0 0.0
    %116 = vmatpush1.msra.mxu0 0.0
    %117 = vmatprep.subr.mxu0 0.0
    %118 = vmatpush1.msra.mxu0 0.0
    %119 = vmatprep.subr.mxu0 0.0
    %120 = vmatpush1.msra.mxu0 0.0
    %121 = vmatprep.subr.mxu0 0.0
    %122 = vmatpush1.msra.mxu0 0.0
    %123 = vmatprep.subr.mxu0 0.0
    %124 = vmatpush1.msra.mxu0 0.0
    %125 = vmatprep.subr.mxu0 0.0
    %126 = vmatpush1.msra.mxu0 0.0
    %127 = vmatprep.subr.mxu0 0.0
    %128 = vmatpush1.msra.mxu0 0.0
    %129 = vmatprep.mubr.f32.mxu0 0.0
    %130 = vmatmul.mubr.f32.gmra.mrb[0].mxu0 %v60
    %v131 = vpop.f32.mrb[0].mxu0
    %v132 = vadd.f32 0.0, %v131
    %v133 = vpop.f32.mrb[0].mxu0
    %134 = vmatprep.mubr.f32.mxu0 0.0
    %135 = vmatmul.mubr.f32.gmra.mrb[0].mxu0 %v63
    %v136 = vpop.f32.mrb[0].mxu0
    %v137 = vadd.f32 0.0, %v136
    %v138 = vpop.f32.mrb[0].mxu0
    %139 = vdwg.mxu0
    %v140 = vmax.f32 %v132, 0.0
    %v142 = vrot.slane %v132, 2
    %v144 = vmax.f32 %v140, %v142
    %v145 = vrot.slane %v132, 4
    %v147 = vmax.f32 %v144, %v145
    %v148 = vrot.slane %v132, 6
    %v150 = vmax.f32 %v147, %v148
    %v151 = vmax.f32 %v150, %v137
    %v153 = vrot.slane %v137, 2
    %v155 = vmax.f32 %v151, %v153
    %v156 = vrot.slane %v137, 4
    %v158 = vmax.f32 %v155, %v156
    %v159 = vrot.slane %v137, 6
    %v161 = vmax.f32 %v158, %v159
    %v162 = vld [vmem:[#allocation2 + $0x80] sm:$0xff]
    %v163 = vld [vmem:[#allocation2 + $0x88] sm:$0xff]
    %v164 = vld [vmem:[#allocation2 + $0x90] sm:$0xff]
    %v165 = vld [vmem:[#allocation2 + $0x98] sm:$0xff]
    %v166 = vld [vmem:[#allocation2 + $0xa0] sm:$0xff]
    %v167 = vld [vmem:[#allocation2 + $0xa8] sm:$0xff]
    %v168 = vld [vmem:[#allocation2 + $0xb0] sm:$0xff]
    %v169 = vld [vmem:[#allocation2 + $0xb8] sm:$0xff]
    %s170 = scalar_lea.vmem [#allocation2], 192
    %v171 = vld [vmem:[%s170] ss:$8 sm:$0x3]
    %v173 = vlaneseq
    %v174 = vshrl.u32 %v173, 7
    %v175 = vsub.s32 0, %v174
    %v176 = vrot.slane %v171, %v175
    %v177 = vlaneseq
    %v178 = vshrl.u32 %v177, 7
    %v179 = vsub.s32 1, %v178
    %v180 = vrot.slane %v171, %v179
    %vm183 = vcmask 261120
    %v184 = vsel %vm183, %v132, 0
    %v186 = vsel %vm183, %v137, 0
    %188 = vmatprep.subr.mxu0 %v163
    %189 = vmatpush1.msra.mxu0 %v162
    %190 = vmatprep.subr.mxu0 %v165
    %191 = vmatpush1.msra.mxu0 %v164
    %192 = vmatprep.subr.mxu0 %v167
    %193 = vmatpush1.msra.mxu0 %v166
    %194 = vmatprep.subr.mxu0 %v169
    %195 = vmatpush1.msra.mxu0 %v168
    %196 = vmatprep.subr.mxu0 0.0
    %197 = vmatpush1.msra.mxu0 0.0
    %198 = vmatprep.subr.mxu0 0.0
    %199 = vmatpush1.msra.mxu0 0.0
    %200 = vmatprep.subr.mxu0 0.0
    %201 = vmatpush1.msra.mxu0 0.0
    %202 = vmatprep.subr.mxu0 0.0
    %203 = vmatpush1.msra.mxu0 0.0
    %204 = vmatprep.subr.mxu0 0.0
    %205 = vmatpush1.msra.mxu0 0.0
    %206 = vmatprep.subr.mxu0 0.0
    %207 = vmatpush1.msra.mxu0 0.0
    %208 = vmatprep.subr.mxu0 0.0
    %209 = vmatpush1.msra.mxu0 0.0
    %210 = vmatprep.subr.mxu0 0.0
    %211 = vmatpush1.msra.mxu0 0.0
    %212 = vmatprep.subr.mxu0 0.0
    %213 = vmatpush1.msra.mxu0 0.0
    %214 = vmatprep.subr.mxu0 0.0
    %215 = vmatpush1.msra.mxu0 0.0
    %216 = vmatprep.subr.mxu0 0.0
    %217 = vmatpush1.msra.mxu0 0.0
    %218 = vmatprep.subr.mxu0 0.0
    %219 = vmatpush1.msra.mxu0 0.0
    %220 = vmatprep.subr.mxu0 0.0
    %221 = vmatpush1.msra.mxu0 0.0
    %222 = vmatprep.subr.mxu0 0.0
    %223 = vmatpush1.msra.mxu0 0.0
    %224 = vmatprep.subr.mxu0 0.0
    %225 = vmatpush1.msra.mxu0 0.0
    %226 = vmatprep.subr.mxu0 0.0
    %227 = vmatpush1.msra.mxu0 0.0
    %228 = vmatprep.subr.mxu0 0.0
    %229 = vmatpush1.msra.mxu0 0.0
    %230 = vmatprep.subr.mxu0 0.0
    %231 = vmatpush1.msra.mxu0 0.0
    %232 = vmatprep.subr.mxu0 0.0
    %233 = vmatpush1.msra.mxu0 0.0
    %234 = vmatprep.subr.mxu0 0.0
    %235 = vmatpush1.msra.mxu0 0.0
    %236 = vmatprep.subr.mxu0 0.0
    %237 = vmatpush1.msra.mxu0 0.0
    %238 = vmatprep.subr.mxu0 0.0
    %239 = vmatpush1.msra.mxu0 0.0
    %240 = vmatprep.subr.mxu0 0.0
    %241 = vmatpush1.msra.mxu0 0.0
    %242 = vmatprep.subr.mxu0 0.0
    %243 = vmatpush1.msra.mxu0 0.0
    %244 = vmatprep.subr.mxu0 0.0
    %245 = vmatpush1.msra.mxu0 0.0
    %246 = vmatprep.subr.mxu0 0.0
    %247 = vmatpush1.msra.mxu0 0.0
    %248 = vmatprep.subr.mxu0 0.0
    %249 = vmatpush1.msra.mxu0 0.0
    %250 = vmatprep.subr.mxu0 0.0
    %251 = vmatpush1.msra.mxu0 0.0
    %252 = vmatprep.mubr.f32.mxu0 0.0
    %253 = vmatmul.mubr.f32.gmra.mrb[0].mxu0 %v184
    %v254 = vpop.f32.mrb[0].mxu0
    %v255 = vadd.f32 %v176, %v254
    %v256 = vpop.f32.mrb[0].mxu0
    %v257 = vadd.f32 %v180, %v256
    %258 = vmatprep.mubr.f32.mxu0 0.0
    %259 = vmatmul.mubr.f32.gmra.mrb[0].mxu0 %v186
    %v260 = vpop.f32.mrb[0].mxu0
    %v261 = vadd.f32 %v176, %v260
    %v262 = vpop.f32.mrb[0].mxu0
    %v263 = vadd.f32 %v180, %v262
    %264 = vdwg.mxu0
    %v265 = vld [vmem:[#allocation2 + $0xd0] sm:$0xff]
    %v266 = vld [vmem:[#allocation2 + $0xd8] sm:$0xff]
    %v267 = vld [vmem:[#allocation2 + $0xe0] sm:$0xff]
    %v268 = vld [vmem:[#allocation2 + $0xe8] sm:$0xff]
    %v269 = vld [vmem:[#allocation2 + $0xf0] sm:$0xff]
    %v270 = vld [vmem:[#allocation2 + $0xf8] sm:$0xff]
    %v271 = vld [vmem:[#allocation2 + $0x100] sm:$0xff]
    %v272 = vld [vmem:[#allocation2 + $0x108] sm:$0xff]
    %v273 = vld [vmem:[#allocation2 + $0x110] sm:$0xff]
    %v274 = vld [vmem:[#allocation2 + $0x118] sm:$0xff]
    %v275 = vld [vmem:[#allocation2 + $0x120] sm:$0xff]
    %v276 = vld [vmem:[#allocation2 + $0x128] sm:$0xff]
    %v277 = vld [vmem:[#allocation2 + $0x130] sm:$0xff]
    %v278 = vld [vmem:[#allocation2 + $0x138] sm:$0xff]
    %v279 = vld [vmem:[#allocation2 + $0x140] sm:$0xff]
    %v280 = vld [vmem:[#allocation2 + $0x148] sm:$0xff]
    %v281 = vxor.u32 %v255, 2147483648
    %v282 = vmul.f32 %v281, 1.442695
    %v283 = vpow.pop %v282
    %v284 = vadd.f32 %v283, 1.0
    %v285 = vrcp.pop %v284
    %v286 = vmul.f32 1.0, %v285
    %v287 = vxor.u32 %v257, 2147483648
    %v288 = vmul.f32 %v287, 1.442695
    %v289 = vpow.pop %v288
    %v290 = vadd.f32 %v289, 1.0
    %v291 = vrcp.pop %v290
    %v292 = vmul.f32 1.0, %v291
    %v293 = vtanh.pop %v257
    %295 = vrot.lane.b32.xlu0 %v293, 64
    %v296 = vpop.permute.xlu0 %295
    %v298 = vmul.f32 %v286, %v296
    %v299 = vtanh.pop %v298
    %v300 = vmul.f32 %v292, %v299
    %v301 = vsel %vm183, %v300, 0.0
    %v302 = vsel %vm183, %v298, 0.0
    %v304 = vsel %vm58, %v301, 0
    %306 = vmatprep.subr.mxu0 %v266
    %307 = vmatpush1.msra.mxu0 %v265
    %308 = vmatprep.subr.mxu0 %v268
    %309 = vmatpush1.msra.mxu0 %v267
    %310 = vmatprep.subr.mxu0 %v270
    %311 = vmatpush1.msra.mxu0 %v269
    %312 = vmatprep.subr.mxu0 %v272
    %313 = vmatpush1.msra.mxu0 %v271
    %314 = vmatprep.subr.mxu0 %v274
    %315 = vmatpush1.msra.mxu0 %v273
    %316 = vmatprep.subr.mxu0 %v276
    %317 = vmatpush1.msra.mxu0 %v275
    %318 = vmatprep.subr.mxu0 %v278
    %319 = vmatpush1.msra.mxu0 %v277
    %320 = vmatprep.subr.mxu0 %v280
    %321 = vmatpush1.msra.mxu0 %v279
    %322 = vmatprep.subr.mxu0 0.0
    %323 = vmatpush1.msra.mxu0 0.0
    %324 = vmatprep.subr.mxu0 0.0
    %325 = vmatpush1.msra.mxu0 0.0
    %326 = vmatprep.subr.mxu0 0.0
    %327 = vmatpush1.msra.mxu0 0.0
    %328 = vmatprep.subr.mxu0 0.0
    %329 = vmatpush1.msra.mxu0 0.0
    %330 = vmatprep.subr.mxu0 0.0
    %331 = vmatpush1.msra.mxu0 0.0
    %332 = vmatprep.subr.mxu0 0.0
    %333 = vmatpush1.msra.mxu0 0.0
    %334 = vmatprep.subr.mxu0 0.0
    %335 = vmatpush1.msra.mxu0 0.0
    %336 = vmatprep.subr.mxu0 0.0
    %337 = vmatpush1.msra.mxu0 0.0
    %338 = vmatprep.subr.mxu0 0.0
    %339 = vmatpush1.msra.mxu0 0.0
    %340 = vmatprep.subr.mxu0 0.0
    %341 = vmatpush1.msra.mxu0 0.0
    %342 = vmatprep.subr.mxu0 0.0
    %343 = vmatpush1.msra.mxu0 0.0
    %344 = vmatprep.subr.mxu0 0.0
    %345 = vmatpush1.msra.mxu0 0.0
    %346 = vmatprep.subr.mxu0 0.0
    %347 = vmatpush1.msra.mxu0 0.0
    %348 = vmatprep.subr.mxu0 0.0
    %349 = vmatpush1.msra.mxu0 0.0
    %350 = vmatprep.subr.mxu0 0.0
    %351 = vmatpush1.msra.mxu0 0.0
    %352 = vmatprep.subr.mxu0 0.0
    %353 = vmatpush1.msra.mxu0 0.0
    %354 = vmatprep.subr.mxu0 0.0
    %355 = vmatpush1.msra.mxu0 0.0
    %356 = vmatprep.subr.mxu0 0.0
    %357 = vmatpush1.msra.mxu0 0.0
    %358 = vmatprep.subr.mxu0 0.0
    %359 = vmatpush1.msra.mxu0 0.0
    %360 = vmatprep.subr.mxu0 0.0
    %361 = vmatpush1.msra.mxu0 0.0
    %362 = vmatprep.subr.mxu0 0.0
    %363 = vmatpush1.msra.mxu0 0.0
    %364 = vmatprep.subr.mxu0 0.0
    %365 = vmatpush1.msra.mxu0 0.0
    %366 = vmatprep.subr.mxu0 0.0
    %367 = vmatpush1.msra.mxu0 0.0
    %368 = vmatprep.subr.mxu0 0.0
    %369 = vmatpush1.msra.mxu0 0.0
    %370 = vmatprep.mubr.f32.mxu0 0.0
    %371 = vmatmul.mubr.f32.gmra.mrb[0].mxu0 %v304
    %v372 = vpop.f32.mrb[0].mxu0
    %v373 = vadd.f32 0.0, %v372
    %v374 = vpop.f32.mrb[0].mxu0
    %v375 = vadd.f32 0.0, %v374
    %376 = vdwg.mxu0
    %v379 = vrot.slane %v373, 6
    %v380 = vrot.slane %v375, 6
    %v383 = vadd.f32 %v255, %v379
    %v384 = vadd.f32 %v257, %v380
    %v385 = vxor.u32 %v383, 2147483648
    %v386 = vxor.u32 %v384, 2147483648
    %v387 = vmul.f32 %v385, 1.442695
    %v388 = vpow.pop %v387
    %v389 = vmul.f32 %v386, 1.442695
    %v390 = vpow.pop %v389
    %v391 = vadd.f32 %v388, 1.0
    %v392 = vadd.f32 %v390, 1.0
    %v393 = vrcp.pop %v391
    %v394 = vmul.f32 1.0, %v393
    %v395 = vrcp.pop %v392
    %v396 = vmul.f32 1.0, %v395
    %v397 = vtanh.pop %v384
    %v399 = vrot.slane %v302, 6
    %400 = vrot.lane.b32.xlu0 %v399, 64
    %v401 = vpop.permute.xlu0 %400
    %v403 = vmul.f32 %v394, %v401
    %405 = vrot.lane.b32.xlu0 %v397, 64
    %v406 = vpop.permute.xlu0 %405
    %v408 = vmul.f32 %v394, %v406
    %410 = vrot.lane.b32.xlu0 %v408, 64
    %v411 = vpop.permute.xlu0 %410
    %v413 = vadd.f32 %v403, %v411
    %v414 = vtanh.pop %v413
    %416 = vrot.lane.b32.xlu0 %v414, 64
    %v417 = vpop.permute.xlu0 %416
    %v419 = vmul.f32 %v396, %v417
    %v420 = vmax.f32 %v419, 0.0
    %v422 = vrot.slane %v419, 2
    %v423 = vsel %vm58, %v422, 0
    %425 = vmatprep.subr.mxu0 %v266
    %426 = vmatpush1.msra.mxu0 %v265
    %427 = vmatprep.subr.mxu0 %v268
    %428 = vmatpush1.msra.mxu0 %v267
    %429 = vmatprep.subr.mxu0 %v270
    %430 = vmatpush1.msra.mxu0 %v269
    %431 = vmatprep.subr.mxu0 %v272
    %432 = vmatpush1.msra.mxu0 %v271
    %433 = vmatprep.subr.mxu0 %v274
    %434 = vmatpush1.msra.mxu0 %v273
    %435 = vmatprep.subr.mxu0 %v276
    %436 = vmatpush1.msra.mxu0 %v275
    %437 = vmatprep.subr.mxu0 %v278
    %438 = vmatpush1.msra.mxu0 %v277
    %439 = vmatprep.subr.mxu0 %v280
    %440 = vmatpush1.msra.mxu0 %v279
    %441 = vmatprep.subr.mxu0 0.0
    %442 = vmatpush1.msra.mxu0 0.0
    %443 = vmatprep.subr.mxu0 0.0
    %444 = vmatpush1.msra.mxu0 0.0
    %445 = vmatprep.subr.mxu0 0.0
    %446 = vmatpush1.msra.mxu0 0.0
    %447 = vmatprep.subr.mxu0 0.0
    %448 = vmatpush1.msra.mxu0 0.0
    %449 = vmatprep.subr.mxu0 0.0
    %450 = vmatpush1.msra.mxu0 0.0
    %451 = vmatprep.subr.mxu0 0.0
    %452 = vmatpush1.msra.mxu0 0.0
    %453 = vmatprep.subr.mxu0 0.0
    %454 = vmatpush1.msra.mxu0 0.0
    %455 = vmatprep.subr.mxu0 0.0
    %456 = vmatpush1.msra.mxu0 0.0
    %457 = vmatprep.subr.mxu0 0.0
    %458 = vmatpush1.msra.mxu0 0.0
    %459 = vmatprep.subr.mxu0 0.0
    %460 = vmatpush1.msra.mxu0 0.0
    %461 = vmatprep.subr.mxu0 0.0
    %462 = vmatpush1.msra.mxu0 0.0
    %463 = vmatprep.subr.mxu0 0.0
    %464 = vmatpush1.msra.mxu0 0.0
    %465 = vmatprep.subr.mxu0 0.0
    %466 = vmatpush1.msra.mxu0 0.0
    %467 = vmatprep.subr.mxu0 0.0
    %468 = vmatpush1.msra.mxu0 0.0
    %469 = vmatprep.subr.mxu0 0.0
    %470 = vmatpush1.msra.mxu0 0.0
    %471 = vmatprep.subr.mxu0 0.0
    %472 = vmatpush1.msra.mxu0 0.0
    %473 = vmatprep.subr.mxu0 0.0
    %474 = vmatpush1.msra.mxu0 0.0
    %475 = vmatprep.subr.mxu0 0.0
    %476 = vmatpush1.msra.mxu0 0.0
    %477 = vmatprep.subr.mxu0 0.0
    %478 = vmatpush1.msra.mxu0 0.0
    %479 = vmatprep.subr.mxu0 0.0
    %480 = vmatpush1.msra.mxu0 0.0
    %481 = vmatprep.subr.mxu0 0.0
    %482 = vmatpush1.msra.mxu0 0.0
    %483 = vmatprep.subr.mxu0 0.0
    %484 = vmatpush1.msra.mxu0 0.0
    %485 = vmatprep.subr.mxu0 0.0
    %486 = vmatpush1.msra.mxu0 0.0
    %487 = vmatprep.subr.mxu0 0.0
    %488 = vmatpush1.msra.mxu0 0.0
    %489 = vmatprep.mubr.f32.mxu0 0.0
    %490 = vmatmul.mubr.f32.gmra.mrb[0].mxu0 %v423
    %v491 = vpop.f32.mrb[0].mxu0
    %v492 = vadd.f32 0.0, %v491
    %v493 = vpop.f32.mrb[0].mxu0
    %v494 = vadd.f32 0.0, %v493
    %495 = vdwg.mxu0
    %v498 = vrot.slane %v492, 4
    %v499 = vrot.slane %v494, 4
    %v502 = vadd.f32 %v255, %v498
    %v503 = vadd.f32 %v257, %v499
    %v504 = vxor.u32 %v502, 2147483648
    %v505 = vxor.u32 %v503, 2147483648
    %v506 = vmul.f32 %v504, 1.442695
    %v507 = vpow.pop %v506
    %v508 = vmul.f32 %v505, 1.442695
    %v509 = vpow.pop %v508
    %v510 = vadd.f32 %v507, 1.0
    %v511 = vadd.f32 %v509, 1.0
    %v512 = vrcp.pop %v510
    %v513 = vmul.f32 1.0, %v512
    %v514 = vrcp.pop %v511
    %v515 = vmul.f32 1.0, %v514
    %v516 = vtanh.pop %v503
    %v518 = vrot.slane %v413, 6
    %v520 = vmul.f32 %v513, %v518
    %522 = vrot.lane.b32.xlu0 %v516, 64
    %v523 = vpop.permute.xlu0 %522
    %v525 = vmul.f32 %v513, %v523
    %527 = vrot.lane.b32.xlu0 %v525, 64
    %v528 = vpop.permute.xlu0 %527
    %v530 = vadd.f32 %v520, %v528
    %v531 = vtanh.pop %v530
    %533 = vrot.lane.b32.xlu0 %v531, 64
    %v534 = vpop.permute.xlu0 %533
    %v536 = vmul.f32 %v515, %v534
    %v538 = vrot.slane %v536, 2
    %v540 = vmax.f32 %v420, %v538
    %v541 = vrot.slane %v536, 4
    %v542 = vsel %vm58, %v541, 0
    %544 = vmatprep.subr.mxu0 %v266
    %545 = vmatpush1.msra.mxu0 %v265
    %546 = vmatprep.subr.mxu0 %v268
    %547 = vmatpush1.msra.mxu0 %v267
    %548 = vmatprep.subr.mxu0 %v270
    %549 = vmatpush1.msra.mxu0 %v269
    %550 = vmatprep.subr.mxu0 %v272
    %551 = vmatpush1.msra.mxu0 %v271
    %552 = vmatprep.subr.mxu0 %v274
    %553 = vmatpush1.msra.mxu0 %v273
    %554 = vmatprep.subr.mxu0 %v276
    %555 = vmatpush1.msra.mxu0 %v275
    %556 = vmatprep.subr.mxu0 %v278
    %557 = vmatpush1.msra.mxu0 %v277
    %558 = vmatprep.subr.mxu0 %v280
    %559 = vmatpush1.msra.mxu0 %v279
    %560 = vmatprep.subr.mxu0 0.0
    %561 = vmatpush1.msra.mxu0 0.0
    %562 = vmatprep.subr.mxu0 0.0
    %563 = vmatpush1.msra.mxu0 0.0
    %564 = vmatprep.subr.mxu0 0.0
    %565 = vmatpush1.msra.mxu0 0.0
    %566 = vmatprep.subr.mxu0 0.0
    %567 = vmatpush1.msra.mxu0 0.0
    %568 = vmatprep.subr.mxu0 0.0
    %569 = vmatpush1.msra.mxu0 0.0
    %570 = vmatprep.subr.mxu0 0.0
    %571 = vmatpush1.msra.mxu0 0.0
    %572 = vmatprep.subr.mxu0 0.0
    %573 = vmatpush1.msra.mxu0 0.0
    %574 = vmatprep.subr.mxu0 0.0
    %575 = vmatpush1.msra.mxu0 0.0
    %576 = vmatprep.subr.mxu0 0.0
    %577 = vmatpush1.msra.mxu0 0.0
    %578 = vmatprep.subr.mxu0 0.0
    %579 = vmatpush1.msra.mxu0 0.0
    %580 = vmatprep.subr.mxu0 0.0
    %581 = vmatpush1.msra.mxu0 0.0
    %582 = vmatprep.subr.mxu0 0.0
    %583 = vmatpush1.msra.mxu0 0.0
    %584 = vmatprep.subr.mxu0 0.0
    %585 = vmatpush1.msra.mxu0 0.0
    %586 = vmatprep.subr.mxu0 0.0
    %587 = vmatpush1.msra.mxu0 0.0
    %588 = vmatprep.subr.mxu0 0.0
    %589 = vmatpush1.msra.mxu0 0.0
    %590 = vmatprep.subr.mxu0 0.0
    %591 = vmatpush1.msra.mxu0 0.0
    %592 = vmatprep.subr.mxu0 0.0
    %593 = vmatpush1.msra.mxu0 0.0
    %594 = vmatprep.subr.mxu0 0.0
    %595 = vmatpush1.msra.mxu0 0.0
    %596 = vmatprep.subr.mxu0 0.0
    %597 = vmatpush1.msra.mxu0 0.0
    %598 = vmatprep.subr.mxu0 0.0
    %599 = vmatpush1.msra.mxu0 0.0
    %600 = vmatprep.subr.mxu0 0.0
    %601 = vmatpush1.msra.mxu0 0.0
    %602 = vmatprep.subr.mxu0 0.0
    %603 = vmatpush1.msra.mxu0 0.0
    %604 = vmatprep.subr.mxu0 0.0
    %605 = vmatpush1.msra.mxu0 0.0
    %606 = vmatprep.subr.mxu0 0.0
    %607 = vmatpush1.msra.mxu0 0.0
    %608 = vmatprep.mubr.f32.mxu0 0.0
    %609 = vmatmul.mubr.f32.gmra.mrb[0].mxu0 %v542
    %v610 = vpop.f32.mrb[0].mxu0
    %v611 = vadd.f32 0.0, %v610
    %v612 = vpop.f32.mrb[0].mxu0
    %v613 = vadd.f32 0.0, %v612
    %614 = vdwg.mxu0
    %v617 = vrot.slane %v611, 2
    %v618 = vrot.slane %v613, 2
    %v621 = vadd.f32 %v255, %v617
    %v622 = vadd.f32 %v257, %v618
    %v623 = vxor.u32 %v621, 2147483648
    %v624 = vxor.u32 %v622, 2147483648
    %v625 = vmul.f32 %v623, 1.442695
    %v626 = vpow.pop %v625
    %v627 = vmul.f32 %v624, 1.442695
    %v628 = vpow.pop %v627
    %v629 = vadd.f32 %v626, 1.0
    %v630 = vadd.f32 %v628, 1.0
    %v631 = vrcp.pop %v629
    %v632 = vmul.f32 1.0, %v631
    %v633 = vrcp.pop %v630
    %v634 = vmul.f32 1.0, %v633
    %v635 = vtanh.pop %v622
    %v637 = vrot.slane %v530, 6
    %v639 = vmul.f32 %v632, %v637
    %641 = vrot.lane.b32.xlu0 %v635, 64
    %v642 = vpop.permute.xlu0 %641
    %v644 = vmul.f32 %v632, %v642
    %646 = vrot.lane.b32.xlu0 %v644, 64
    %v647 = vpop.permute.xlu0 %646
    %v649 = vadd.f32 %v639, %v647
    %v650 = vtanh.pop %v649
    %652 = vrot.lane.b32.xlu0 %v650, 64
    %v653 = vpop.permute.xlu0 %652
    %v655 = vmul.f32 %v634, %v653
    %v657 = vrot.slane %v655, 4
    %v659 = vmax.f32 %v540, %v657
    %v660 = vrot.slane %v655, 6
    %v661 = vsel %vm58, %v660, 0
    %663 = vmatprep.subr.mxu0 %v266
    %664 = vmatpush1.msra.mxu0 %v265
    %665 = vmatprep.subr.mxu0 %v268
    %666 = vmatpush1.msra.mxu0 %v267
    %667 = vmatprep.subr.mxu0 %v270
    %668 = vmatpush1.msra.mxu0 %v269
    %669 = vmatprep.subr.mxu0 %v272
    %670 = vmatpush1.msra.mxu0 %v271
    %671 = vmatprep.subr.mxu0 %v274
    %672 = vmatpush1.msra.mxu0 %v273
    %673 = vmatprep.subr.mxu0 %v276
    %674 = vmatpush1.msra.mxu0 %v275
    %675 = vmatprep.subr.mxu0 %v278
    %676 = vmatpush1.msra.mxu0 %v277
    %677 = vmatprep.subr.mxu0 %v280
    %678 = vmatpush1.msra.mxu0 %v279
    %679 = vmatprep.subr.mxu0 0.0
    %680 = vmatpush1.msra.mxu0 0.0
    %681 = vmatprep.subr.mxu0 0.0
    %682 = vmatpush1.msra.mxu0 0.0
    %683 = vmatprep.subr.mxu0 0.0
    %684 = vmatpush1.msra.mxu0 0.0
    %685 = vmatprep.subr.mxu0 0.0
    %686 = vmatpush1.msra.mxu0 0.0
    %687 = vmatprep.subr.mxu0 0.0
    %688 = vmatpush1.msra.mxu0 0.0
    %689 = vmatprep.subr.mxu0 0.0
    %690 = vmatpush1.msra.mxu0 0.0
    %691 = vmatprep.subr.mxu0 0.0
    %692 = vmatpush1.msra.mxu0 0.0
    %693 = vmatprep.subr.mxu0 0.0
    %694 = vmatpush1.msra.mxu0 0.0
    %695 = vmatprep.subr.mxu0 0.0
    %696 = vmatpush1.msra.mxu0 0.0
    %697 = vmatprep.subr.mxu0 0.0
    %698 = vmatpush1.msra.mxu0 0.0
    %699 = vmatprep.subr.mxu0 0.0
    %700 = vmatpush1.msra.mxu0 0.0
    %701 = vmatprep.subr.mxu0 0.0
    %702 = vmatpush1.msra.mxu0 0.0
    %703 = vmatprep.subr.mxu0 0.0
    %704 = vmatpush1.msra.mxu0 0.0
    %705 = vmatprep.subr.mxu0 0.0
    %706 = vmatpush1.msra.mxu0 0.0
    %707 = vmatprep.subr.mxu0 0.0
    %708 = vmatpush1.msra.mxu0 0.0
    %709 = vmatprep.subr.mxu0 0.0
    %710 = vmatpush1.msra.mxu0 0.0
    %711 = vmatprep.subr.mxu0 0.0
    %712 = vmatpush1.msra.mxu0 0.0
    %713 = vmatprep.subr.mxu0 0.0
    %714 = vmatpush1.msra.mxu0 0.0
    %715 = vmatprep.subr.mxu0 0.0
    %716 = vmatpush1.msra.mxu0 0.0
    %717 = vmatprep.subr.mxu0 0.0
    %718 = vmatpush1.msra.mxu0 0.0
    %719 = vmatprep.subr.mxu0 0.0
    %720 = vmatpush1.msra.mxu0 0.0
    %721 = vmatprep.subr.mxu0 0.0
    %722 = vmatpush1.msra.mxu0 0.0
    %723 = vmatprep.subr.mxu0 0.0
    %724 = vmatpush1.msra.mxu0 0.0
    %725 = vmatprep.subr.mxu0 0.0
    %726 = vmatpush1.msra.mxu0 0.0
    %727 = vmatprep.mubr.f32.mxu0 0.0
    %728 = vmatmul.mubr.f32.gmra.mrb[0].mxu0 %v661
    %v729 = vpop.f32.mrb[0].mxu0
    %v730 = vadd.f32 0.0, %v729
    %v731 = vpop.f32.mrb[0].mxu0
    %v732 = vadd.f32 0.0, %v731
    %733 = vdwg.mxu0
    %v734 = vadd.f32 %v261, %v730
    %v735 = vadd.f32 %v263, %v732
    %v736 = vxor.u32 %v734, 2147483648
    %v737 = vxor.u32 %v735, 2147483648
    %v738 = vmul.f32 %v736, 1.442695
    %v739 = vpow.pop %v738
    %v740 = vmul.f32 %v737, 1.442695
    %v741 = vpow.pop %v740
    %v742 = vadd.f32 %v739, 1.0
    %v743 = vadd.f32 %v741, 1.0
    %v744 = vrcp.pop %v742
    %v745 = vmul.f32 1.0, %v744
    %v746 = vrcp.pop %v743
    %v747 = vmul.f32 1.0, %v746
    %v748 = vtanh.pop %v735
    %v750 = vrot.slane %v649, 6
    %v752 = vmul.f32 %v745, %v750
    %754 = vrot.lane.b32.xlu0 %v748, 64
    %v755 = vpop.permute.xlu0 %754
    %v757 = vmul.f32 %v745, %v755
    %759 = vrot.lane.b32.xlu0 %v757, 64
    %v760 = vpop.permute.xlu0 %759
    %v762 = vadd.f32 %v752, %v760
    %v763 = vtanh.pop %v762
    %765 = vrot.lane.b32.xlu0 %v763, 64
    %v766 = vpop.permute.xlu0 %765
    %v768 = vmul.f32 %v747, %v766
    %v770 = vrot.slane %v768, 6
    %v772 = vmax.f32 %v659, %v770
    %v773 = vsel %vm58, %v768, 0
    %775 = vmatprep.subr.mxu0 %v266
    %776 = vmatpush1.msra.mxu0 %v265
    %777 = vmatprep.subr.mxu0 %v268
    %778 = vmatpush1.msra.mxu0 %v267
    %779 = vmatprep.subr.mxu0 %v270
    %780 = vmatpush1.msra.mxu0 %v269
    %781 = vmatprep.subr.mxu0 %v272
    %782 = vmatpush1.msra.mxu0 %v271
    %783 = vmatprep.subr.mxu0 %v274
    %784 = vmatpush1.msra.mxu0 %v273
    %785 = vmatprep.subr.mxu0 %v276
    %786 = vmatpush1.msra.mxu0 %v275
    %787 = vmatprep.subr.mxu0 %v278
    %788 = vmatpush1.msra.mxu0 %v277
    %789 = vmatprep.subr.mxu0 %v280
    %790 = vmatpush1.msra.mxu0 %v279
    %791 = vmatprep.subr.mxu0 0.0
    %792 = vmatpush1.msra.mxu0 0.0
    %793 = vmatprep.subr.mxu0 0.0
    %794 = vmatpush1.msra.mxu0 0.0
    %795 = vmatprep.subr.mxu0 0.0
    %796 = vmatpush1.msra.mxu0 0.0
    %797 = vmatprep.subr.mxu0 0.0
    %798 = vmatpush1.msra.mxu0 0.0
    %799 = vmatprep.subr.mxu0 0.0
    %800 = vmatpush1.msra.mxu0 0.0
    %801 = vmatprep.subr.mxu0 0.0
    %802 = vmatpush1.msra.mxu0 0.0
    %803 = vmatprep.subr.mxu0 0.0
    %804 = vmatpush1.msra.mxu0 0.0
    %805 = vmatprep.subr.mxu0 0.0
    %806 = vmatpush1.msra.mxu0 0.0
    %807 = vmatprep.subr.mxu0 0.0
    %808 = vmatpush1.msra.mxu0 0.0
    %809 = vmatprep.subr.mxu0 0.0
    %810 = vmatpush1.msra.mxu0 0.0
    %811 = vmatprep.subr.mxu0 0.0
    %812 = vmatpush1.msra.mxu0 0.0
    %813 = vmatprep.subr.mxu0 0.0
    %814 = vmatpush1.msra.mxu0 0.0
    %815 = vmatprep.subr.mxu0 0.0
    %816 = vmatpush1.msra.mxu0 0.0
    %817 = vmatprep.subr.mxu0 0.0
    %818 = vmatpush1.msra.mxu0 0.0
    %819 = vmatprep.subr.mxu0 0.0
    %820 = vmatpush1.msra.mxu0 0.0
    %821 = vmatprep.subr.mxu0 0.0
    %822 = vmatpush1.msra.mxu0 0.0
    %823 = vmatprep.subr.mxu0 0.0
    %824 = vmatpush1.msra.mxu0 0.0
    %825 = vmatprep.subr.mxu0 0.0
    %826 = vmatpush1.msra.mxu0 0.0
    %827 = vmatprep.subr.mxu0 0.0
    %828 = vmatpush1.msra.mxu0 0.0
    %829 = vmatprep.subr.mxu0 0.0
    %830 = vmatpush1.msra.mxu0 0.0
    %831 = vmatprep.subr.mxu0 0.0
    %832 = vmatpush1.msra.mxu0 0.0
    %833 = vmatprep.subr.mxu0 0.0
    %834 = vmatpush1.msra.mxu0 0.0
    %835 = vmatprep.subr.mxu0 0.0
    %836 = vmatpush1.msra.mxu0 0.0
    %837 = vmatprep.subr.mxu0 0.0
    %838 = vmatpush1.msra.mxu0 0.0
    %839 = vmatprep.mubr.f32.mxu0 0.0
    %840 = vmatmul.mubr.f32.gmra.mrb[0].mxu0 %v773
    %v841 = vpop.f32.mrb[0].mxu0
    %v842 = vadd.f32 0.0, %v841
    %v843 = vpop.f32.mrb[0].mxu0
    %v844 = vadd.f32 0.0, %v843
    %845 = vdwg.mxu0
    %v848 = vrot.slane %v842, 6
    %v849 = vrot.slane %v844, 6
    %v852 = vadd.f32 %v261, %v848
    %v853 = vadd.f32 %v263, %v849
    %v854 = vxor.u32 %v852, 2147483648
    %v855 = vxor.u32 %v853, 2147483648
    %v856 = vmul.f32 %v854, 1.442695
    %v857 = vpow.pop %v856
    %v858 = vmul.f32 %v855, 1.442695
    %v859 = vpow.pop %v858
    %v860 = vadd.f32 %v857, 1.0
    %v861 = vadd.f32 %v859, 1.0
    %v862 = vrcp.pop %v860
    %v863 = vmul.f32 1.0, %v862
    %v864 = vrcp.pop %v861
    %v865 = vmul.f32 1.0, %v864
    %v866 = vtanh.pop %v853
    %v868 = vrot.slane %v762, 6
    %v870 = vmul.f32 %v863, %v868
    %872 = vrot.lane.b32.xlu0 %v866, 64
    %v873 = vpop.permute.xlu0 %872
    %v875 = vmul.f32 %v863, %v873
    %877 = vrot.lane.b32.xlu0 %v875, 64
    %v878 = vpop.permute.xlu0 %877
    %v880 = vadd.f32 %v870, %v878
    %v881 = vtanh.pop %v880
    %883 = vrot.lane.b32.xlu0 %v881, 64
    %v884 = vpop.permute.xlu0 %883
    %v886 = vmul.f32 %v865, %v884
    %v887 = vmax.f32 %v772, %v886
    %v889 = vrot.slane %v886, 2
    %v890 = vsel %vm58, %v889, 0
    %892 = vmatprep.subr.mxu0 %v266
    %893 = vmatpush1.msra.mxu0 %v265
    %894 = vmatprep.subr.mxu0 %v268
    %895 = vmatpush1.msra.mxu0 %v267
    %896 = vmatprep.subr.mxu0 %v270
    %897 = vmatpush1.msra.mxu0 %v269
    %898 = vmatprep.subr.mxu0 %v272
    %899 = vmatpush1.msra.mxu0 %v271
    %900 = vmatprep.subr.mxu0 %v274
    %901 = vmatpush1.msra.mxu0 %v273
    %902 = vmatprep.subr.mxu0 %v276
    %903 = vmatpush1.msra.mxu0 %v275
    %904 = vmatprep.subr.mxu0 %v278
    %905 = vmatpush1.msra.mxu0 %v277
    %906 = vmatprep.subr.mxu0 %v280
    %907 = vmatpush1.msra.mxu0 %v279
    %908 = vmatprep.subr.mxu0 0.0
    %909 = vmatpush1.msra.mxu0 0.0
    %910 = vmatprep.subr.mxu0 0.0
    %911 = vmatpush1.msra.mxu0 0.0
    %912 = vmatprep.subr.mxu0 0.0
    %913 = vmatpush1.msra.mxu0 0.0
    %914 = vmatprep.subr.mxu0 0.0
    %915 = vmatpush1.msra.mxu0 0.0
    %916 = vmatprep.subr.mxu0 0.0
    %917 = vmatpush1.msra.mxu0 0.0
    %918 = vmatprep.subr.mxu0 0.0
    %919 = vmatpush1.msra.mxu0 0.0
    %920 = vmatprep.subr.mxu0 0.0
    %921 = vmatpush1.msra.mxu0 0.0
    %922 = vmatprep.subr.mxu0 0.0
    %923 = vmatpush1.msra.mxu0 0.0
    %924 = vmatprep.subr.mxu0 0.0
    %925 = vmatpush1.msra.mxu0 0.0
    %926 = vmatprep.subr.mxu0 0.0
    %927 = vmatpush1.msra.mxu0 0.0
    %928 = vmatprep.subr.mxu0 0.0
    %929 = vmatpush1.msra.mxu0 0.0
    %930 = vmatprep.subr.mxu0 0.0
    %931 = vmatpush1.msra.mxu0 0.0
    %932 = vmatprep.subr.mxu0 0.0
    %933 = vmatpush1.msra.mxu0 0.0
    %934 = vmatprep.subr.mxu0 0.0
    %935 = vmatpush1.msra.mxu0 0.0
    %936 = vmatprep.subr.mxu0 0.0
    %937 = vmatpush1.msra.mxu0 0.0
    %938 = vmatprep.subr.mxu0 0.0
    %939 = vmatpush1.msra.mxu0 0.0
    %940 = vmatprep.subr.mxu0 0.0
    %941 = vmatpush1.msra.mxu0 0.0
    %942 = vmatprep.subr.mxu0 0.0
    %943 = vmatpush1.msra.mxu0 0.0
    %944 = vmatprep.subr.mxu0 0.0
    %945 = vmatpush1.msra.mxu0 0.0
    %946 = vmatprep.subr.mxu0 0.0
    %947 = vmatpush1.msra.mxu0 0.0
    %948 = vmatprep.subr.mxu0 0.0
    %949 = vmatpush1.msra.mxu0 0.0
    %950 = vmatprep.subr.mxu0 0.0
    %951 = vmatpush1.msra.mxu0 0.0
    %952 = vmatprep.subr.mxu0 0.0
    %953 = vmatpush1.msra.mxu0 0.0
    %954 = vmatprep.subr.mxu0 0.0
    %955 = vmatpush1.msra.mxu0 0.0
    %956 = vmatprep.mubr.f32.mxu0 0.0
    %957 = vmatmul.mubr.f32.gmra.mrb[0].mxu0 %v890
    %v958 = vpop.f32.mrb[0].mxu0
    %v959 = vadd.f32 0.0, %v958
    %v960 = vpop.f32.mrb[0].mxu0
    %v961 = vadd.f32 0.0, %v960
    %962 = vdwg.mxu0
    %v965 = vrot.slane %v959, 4
    %v966 = vrot.slane %v961, 4
    %v969 = vadd.f32 %v261, %v965
    %v970 = vadd.f32 %v263, %v966
    %v971 = vxor.u32 %v969, 2147483648
    %v972 = vxor.u32 %v970, 2147483648
    %v973 = vmul.f32 %v971, 1.442695
    %v974 = vpow.pop %v973
    %v975 = vmul.f32 %v972, 1.442695
    %v976 = vpow.pop %v975
    %v977 = vadd.f32 %v974, 1.0
    %v978 = vadd.f32 %v976, 1.0
    %v979 = vrcp.pop %v977
    %v980 = vmul.f32 1.0, %v979
    %v981 = vrcp.pop %v978
    %v982 = vmul.f32 1.0, %v981
    %v983 = vtanh.pop %v970
    %v985 = vrot.slane %v880, 6
    %v987 = vmul.f32 %v980, %v985
    %989 = vrot.lane.b32.xlu0 %v983, 64
    %v990 = vpop.permute.xlu0 %989
    %v992 = vmul.f32 %v980, %v990
    %994 = vrot.lane.b32.xlu0 %v992, 64
    %v995 = vpop.permute.xlu0 %994
    %v997 = vadd.f32 %v987, %v995
    %v998 = vtanh.pop %v997
    %1000 = vrot.lane.b32.xlu0 %v998, 64
    %v1001 = vpop.permute.xlu0 %1000
    %v1003 = vmul.f32 %v982, %v1001
    %v1005 = vrot.slane %v1003, 2
    %v1007 = vmax.f32 %v887, %v1005
    %v1008 = vrot.slane %v1003, 4
    %v1009 = vsel %vm58, %v1008, 0
    %1011 = vmatprep.subr.mxu0 %v266
    %1012 = vmatpush1.msra.mxu0 %v265
    %1013 = vmatprep.subr.mxu0 %v268
    %1014 = vmatpush1.msra.mxu0 %v267
    %1015 = vmatprep.subr.mxu0 %v270
    %1016 = vmatpush1.msra.mxu0 %v269
    %1017 = vmatprep.subr.mxu0 %v272
    %1018 = vmatpush1.msra.mxu0 %v271
    %1019 = vmatprep.subr.mxu0 %v274
    %1020 = vmatpush1.msra.mxu0 %v273
    %1021 = vmatprep.subr.mxu0 %v276
    %1022 = vmatpush1.msra.mxu0 %v275
    %1023 = vmatprep.subr.mxu0 %v278
    %1024 = vmatpush1.msra.mxu0 %v277
    %1025 = vmatprep.subr.mxu0 %v280
    %1026 = vmatpush1.msra.mxu0 %v279
    %1027 = vmatprep.subr.mxu0 0.0
    %1028 = vmatpush1.msra.mxu0 0.0
    %1029 = vmatprep.subr.mxu0 0.0
    %1030 = vmatpush1.msra.mxu0 0.0
    %1031 = vmatprep.subr.mxu0 0.0
    %1032 = vmatpush1.msra.mxu0 0.0
    %1033 = vmatprep.subr.mxu0 0.0
    %1034 = vmatpush1.msra.mxu0 0.0
    %1035 = vmatprep.subr.mxu0 0.0
    %1036 = vmatpush1.msra.mxu0 0.0
    %1037 = vmatprep.subr.mxu0 0.0
    %1038 = vmatpush1.msra.mxu0 0.0
    %1039 = vmatprep.subr.mxu0 0.0
    %1040 = vmatpush1.msra.mxu0 0.0
    %1041 = vmatprep.subr.mxu0 0.0
    %1042 = vmatpush1.msra.mxu0 0.0
    %1043 = vmatprep.subr.mxu0 0.0
    %1044 = vmatpush1.msra.mxu0 0.0
    %1045 = vmatprep.subr.mxu0 0.0
    %1046 = vmatpush1.msra.mxu0 0.0
    %1047 = vmatprep.subr.mxu0 0.0
    %1048 = vmatpush1.msra.mxu0 0.0
    %1049 = vmatprep.subr.mxu0 0.0
    %1050 = vmatpush1.msra.mxu0 0.0
    %1051 = vmatprep.subr.mxu0 0.0
    %1052 = vmatpush1.msra.mxu0 0.0
    %1053 = vmatprep.subr.mxu0 0.0
    %1054 = vmatpush1.msra.mxu0 0.0
    %1055 = vmatprep.subr.mxu0 0.0
    %1056 = vmatpush1.msra.mxu0 0.0
    %1057 = vmatprep.subr.mxu0 0.0
    %1058 = vmatpush1.msra.mxu0 0.0
    %1059 = vmatprep.subr.mxu0 0.0
    %1060 = vmatpush1.msra.mxu0 0.0
    %1061 = vmatprep.subr.mxu0 0.0
    %1062 = vmatpush1.msra.mxu0 0.0
    %1063 = vmatprep.subr.mxu0 0.0
    %1064 = vmatpush1.msra.mxu0 0.0
    %1065 = vmatprep.subr.mxu0 0.0
    %1066 = vmatpush1.msra.mxu0 0.0
    %1067 = vmatprep.subr.mxu0 0.0
    %1068 = vmatpush1.msra.mxu0 0.0
    %1069 = vmatprep.subr.mxu0 0.0
    %1070 = vmatpush1.msra.mxu0 0.0
    %1071 = vmatprep.subr.mxu0 0.0
    %1072 = vmatpush1.msra.mxu0 0.0
    %1073 = vmatprep.subr.mxu0 0.0
    %1074 = vmatpush1.msra.mxu0 0.0
    %1075 = vmatprep.mubr.f32.mxu0 0.0
    %1076 = vmatmul.mubr.f32.gmra.mrb[0].mxu0 %v1009
    %v1077 = vpop.f32.mrb[0].mxu0
    %v1078 = vadd.f32 0.0, %v1077
    %v1079 = vpop.f32.mrb[0].mxu0
    %v1080 = vadd.f32 0.0, %v1079
    %1081 = vdwg.mxu0
    %v1084 = vrot.slane %v1078, 2
    %v1085 = vrot.slane %v1080, 2
    %v1088 = vadd.f32 %v261, %v1084
    %v1089 = vadd.f32 %v263, %v1085
    %v1090 = vxor.u32 %v1088, 2147483648
    %v1091 = vxor.u32 %v1089, 2147483648
    %v1092 = vmul.f32 %v1090, 1.442695
    %v1093 = vpow.pop %v1092
    %v1094 = vmul.f32 %v1091, 1.442695
    %v1095 = vpow.pop %v1094
    %v1096 = vadd.f32 %v1093, 1.0
    %v1097 = vadd.f32 %v1095, 1.0
    %v1098 = vrcp.pop %v1096
    %v1099 = vmul.f32 1.0, %v1098
    %v1100 = vrcp.pop %v1097
    %v1101 = vmul.f32 1.0, %v1100
    %v1102 = vtanh.pop %v1089
    %v1104 = vrot.slane %v997, 6
    %v1106 = vmul.f32 %v1099, %v1104
    %1108 = vrot.lane.b32.xlu0 %v1102, 64
    %v1109 = vpop.permute.xlu0 %1108
    %v1111 = vmul.f32 %v1099, %v1109
    %1113 = vrot.lane.b32.xlu0 %v1111, 64
    %v1114 = vpop.permute.xlu0 %1113
    %v1116 = vadd.f32 %v1106, %v1114
    %v1117 = vtanh.pop %v1116
    %1119 = vrot.lane.b32.xlu0 %v1117, 64
    %v1120 = vpop.permute.xlu0 %1119
    %v1122 = vmul.f32 %v1101, %v1120
    %v1124 = vrot.slane %v1122, 4
    %v1126 = vmax.f32 %v1007, %v1124
    %v1127 = vrot.slane %v1122, 6
    %v1128 = vsel %vm58, %v1127, 0
    %1130 = vmatprep.subr.mxu0 %v266
    %1131 = vmatpush1.msra.mxu0 %v265
    %1132 = vmatprep.subr.mxu0 %v268
    %1133 = vmatpush1.msra.mxu0 %v267
    %1134 = vmatprep.subr.mxu0 %v270
    %1135 = vmatpush1.msra.mxu0 %v269
    %1136 = vmatprep.subr.mxu0 %v272
    %1137 = vmatpush1.msra.mxu0 %v271
    %1138 = vmatprep.subr.mxu0 %v274
    %1139 = vmatpush1.msra.mxu0 %v273
    %1140 = vmatprep.subr.mxu0 %v276
    %1141 = vmatpush1.msra.mxu0 %v275
    %1142 = vmatprep.subr.mxu0 %v278
    %1143 = vmatpush1.msra.mxu0 %v277
    %1144 = vmatprep.subr.mxu0 %v280
    %1145 = vmatpush1.msra.mxu0 %v279
    %1146 = vmatprep.subr.mxu0 0.0
    %1147 = vmatpush1.msra.mxu0 0.0
    %1148 = vmatprep.subr.mxu0 0.0
    %1149 = vmatpush1.msra.mxu0 0.0
    %1150 = vmatprep.subr.mxu0 0.0
    %1151 = vmatpush1.msra.mxu0 0.0
    %1152 = vmatprep.subr.mxu0 0.0
    %1153 = vmatpush1.msra.mxu0 0.0
    %1154 = vmatprep.subr.mxu0 0.0
    %1155 = vmatpush1.msra.mxu0 0.0
    %1156 = vmatprep.subr.mxu0 0.0
    %1157 = vmatpush1.msra.mxu0 0.0
    %1158 = vmatprep.subr.mxu0 0.0
    %1159 = vmatpush1.msra.mxu0 0.0
    %1160 = vmatprep.subr.mxu0 0.0
    %1161 = vmatpush1.msra.mxu0 0.0
    %1162 = vmatprep.subr.mxu0 0.0
    %1163 = vmatpush1.msra.mxu0 0.0
    %1164 = vmatprep.subr.mxu0 0.0
    %1165 = vmatpush1.msra.mxu0 0.0
    %1166 = vmatprep.subr.mxu0 0.0
    %1167 = vmatpush1.msra.mxu0 0.0
    %1168 = vmatprep.subr.mxu0 0.0
    %1169 = vmatpush1.msra.mxu0 0.0
    %1170 = vmatprep.subr.mxu0 0.0
    %1171 = vmatpush1.msra.mxu0 0.0
    %1172 = vmatprep.subr.mxu0 0.0
    %1173 = vmatpush1.msra.mxu0 0.0
    %1174 = vmatprep.subr.mxu0 0.0
    %1175 = vmatpush1.msra.mxu0 0.0
    %1176 = vmatprep.subr.mxu0 0.0
    %1177 = vmatpush1.msra.mxu0 0.0
    %1178 = vmatprep.subr.mxu0 0.0
    %1179 = vmatpush1.msra.mxu0 0.0
    %1180 = vmatprep.subr.mxu0 0.0
    %1181 = vmatpush1.msra.mxu0 0.0
    %1182 = vmatprep.subr.mxu0 0.0
    %1183 = vmatpush1.msra.mxu0 0.0
    %1184 = vmatprep.subr.mxu0 0.0
    %1185 = vmatpush1.msra.mxu0 0.0
    %1186 = vmatprep.subr.mxu0 0.0
    %1187 = vmatpush1.msra.mxu0 0.0
    %1188 = vmatprep.subr.mxu0 0.0
    %1189 = vmatpush1.msra.mxu0 0.0
    %1190 = vmatprep.subr.mxu0 0.0
    %1191 = vmatpush1.msra.mxu0 0.0
    %1192 = vmatprep.subr.mxu0 0.0
    %1193 = vmatpush1.msra.mxu0 0.0
    %1194 = vmatprep.mubr.f32.mxu0 0.0
    %1195 = vmatmul.mubr.f32.gmra.mrb[0].mxu0 %v1128
    %v1196 = vpop.f32.mrb[0].mxu0
    %v1197 = vadd.f32 0.0, %v1196
    %v1198 = vpop.f32.mrb[0].mxu0
    %v1199 = vadd.f32 0.0, %v1198
    %1200 = vdwg.mxu0
    %v1201 = vadd.f32 %v176, %v1197
    %v1202 = vadd.f32 %v180, %v1199
    %v1203 = vxor.u32 %v1201, 2147483648
    %v1204 = vxor.u32 %v1202, 2147483648
    %v1205 = vmul.f32 %v1203, 1.442695
    %v1206 = vpow.pop %v1205
    %v1207 = vmul.f32 %v1204, 1.442695
    %v1208 = vpow.pop %v1207
    %v1209 = vadd.f32 %v1206, 1.0
    %v1210 = vadd.f32 %v1208, 1.0
    %v1211 = vrcp.pop %v1209
    %v1212 = vmul.f32 1.0, %v1211
    %v1213 = vrcp.pop %v1210
    %v1214 = vmul.f32 1.0, %v1213
    %v1215 = vtanh.pop %v1202
    %v1217 = vrot.slane %v1116, 6
    %v1219 = vmul.f32 %v1212, %v1217
    %1221 = vrot.lane.b32.xlu0 %v1215, 64
    %v1222 = vpop.permute.xlu0 %1221
    %v1224 = vmul.f32 %v1212, %v1222
    %1226 = vrot.lane.b32.xlu0 %v1224, 64
    %v1227 = vpop.permute.xlu0 %1226
    %v1229 = vadd.f32 %v1219, %v1227
    %v1230 = vtanh.pop %v1229
    %1232 = vrot.lane.b32.xlu0 %v1230, 64
    %v1233 = vpop.permute.xlu0 %1232
    %v1235 = vmul.f32 %v1214, %v1233
    %v1237 = vrot.slane %v1235, 6
    %v1239 = vmax.f32 %v1126, %v1237
    %v1241 = vrot.slane %v1239, 2
    %v1243 = vsel %vm183, %v161, %v1241
    %v1244 = vld [vmem:[#allocation2 + $0x150] sm:$0xff]
    %v1245 = vld [vmem:[#allocation2 + $0x158] sm:$0xff]
    %v1246 = vld [vmem:[#allocation2 + $0x160] sm:$0xff]
    %v1247 = vld [vmem:[#allocation2 + $0x168] sm:$0xff]
    %v1248 = vld [vmem:[#allocation2 + $0x170] sm:$0xff]
    %v1249 = vld [vmem:[#allocation2 + $0x178] sm:$0xff]
    %v1250 = vld [vmem:[#allocation2 + $0x180] sm:$0xff]
    %v1251 = vld [vmem:[#allocation2 + $0x188] sm:$0xff]
    %v1252 = vld [vmem:[#allocation2 + $0x190] sm:$0xff]
    %v1253 = vld [vmem:[#allocation2 + $0x198] sm:$0xff]
    %v1254 = vld [vmem:[#allocation2 + $0x1a0] sm:$0xff]
    %v1255 = vld [vmem:[#allocation2 + $0x1a8] sm:$0xff]
    %v1256 = vld [vmem:[#allocation2 + $0x1b0] sm:$0xff]
    %v1257 = vld [vmem:[#allocation2 + $0x1b8] sm:$0xff]
    %v1258 = vld [vmem:[#allocation2 + $0x1c0] sm:$0xff]
    %v1259 = vld [vmem:[#allocation2 + $0x1c8] sm:$0xff]
    %s1260 = scalar_lea.vmem [#allocation2], 464
    %v1261 = vld [vmem:[%s1260] ss:$8 sm:$0x3]
    %v1263 = vlaneseq
    %v1264 = vshrl.u32 %v1263, 7
    %v1265 = vsub.s32 0, %v1264
    %v1266 = vrot.slane %v1261, %v1265
    %v1269 = vsel %vm58, %v1243, 0
    %1271 = vmatprep.subr.mxu0 %v1245
    %1272 = vmatpush1.msra.mxu0 %v1244
    %1273 = vmatprep.subr.mxu0 %v1247
    %1274 = vmatpush1.msra.mxu0 %v1246
    %1275 = vmatprep.subr.mxu0 %v1249
    %1276 = vmatpush1.msra.mxu0 %v1248
    %1277 = vmatprep.subr.mxu0 %v1251
    %1278 = vmatpush1.msra.mxu0 %v1250
    %1279 = vmatprep.subr.mxu0 %v1253
    %1280 = vmatpush1.msra.mxu0 %v1252
    %1281 = vmatprep.subr.mxu0 %v1255
    %1282 = vmatpush1.msra.mxu0 %v1254
    %1283 = vmatprep.subr.mxu0 %v1257
    %1284 = vmatpush1.msra.mxu0 %v1256
    %1285 = vmatprep.subr.mxu0 %v1259
    %1286 = vmatpush1.msra.mxu0 %v1258
    %1287 = vmatprep.subr.mxu0 0.0
    %1288 = vmatpush1.msra.mxu0 0.0
    %1289 = vmatprep.subr.mxu0 0.0
    %1290 = vmatpush1.msra.mxu0 0.0
    %1291 = vmatprep.subr.mxu0 0.0
    %1292 = vmatpush1.msra.mxu0 0.0
    %1293 = vmatprep.subr.mxu0 0.0
    %1294 = vmatpush1.msra.mxu0 0.0
    %1295 = vmatprep.subr.mxu0 0.0
    %1296 = vmatpush1.msra.mxu0 0.0
    %1297 = vmatprep.subr.mxu0 0.0
    %1298 = vmatpush1.msra.mxu0 0.0
    %1299 = vmatprep.subr.mxu0 0.0
    %1300 = vmatpush1.msra.mxu0 0.0
    %1301 = vmatprep.subr.mxu0 0.0
    %1302 = vmatpush1.msra.mxu0 0.0
    %1303 = vmatprep.subr.mxu0 0.0
    %1304 = vmatpush1.msra.mxu0 0.0
    %1305 = vmatprep.subr.mxu0 0.0
    %1306 = vmatpush1.msra.mxu0 0.0
    %1307 = vmatprep.subr.mxu0 0.0
    %1308 = vmatpush1.msra.mxu0 0.0
    %1309 = vmatprep.subr.mxu0 0.0
    %1310 = vmatpush1.msra.mxu0 0.0
    %1311 = vmatprep.subr.mxu0 0.0
    %1312 = vmatpush1.msra.mxu0 0.0
    %1313 = vmatprep.subr.mxu0 0.0
    %1314 = vmatpush1.msra.mxu0 0.0
    %1315 = vmatprep.subr.mxu0 0.0
    %1316 = vmatpush1.msra.mxu0 0.0
    %1317 = vmatprep.subr.mxu0 0.0
    %1318 = vmatpush1.msra.mxu0 0.0
    %1319 = vmatprep.subr.mxu0 0.0
    %1320 = vmatpush1.msra.mxu0 0.0
    %1321 = vmatprep.subr.mxu0 0.0
    %1322 = vmatpush1.msra.mxu0 0.0
    %1323 = vmatprep.subr.mxu0 0.0
    %1324 = vmatpush1.msra.mxu0 0.0
    %1325 = vmatprep.subr.mxu0 0.0
    %1326 = vmatpush1.msra.mxu0 0.0
    %1327 = vmatprep.subr.mxu0 0.0
    %1328 = vmatpush1.msra.mxu0 0.0
    %1329 = vmatprep.subr.mxu0 0.0
    %1330 = vmatpush1.msra.mxu0 0.0
    %1331 = vmatprep.subr.mxu0 0.0
    %1332 = vmatpush1.msra.mxu0 0.0
    %1333 = vmatprep.subr.mxu0 0.0
    %1334 = vmatpush1.msra.mxu0 0.0
    %1335 = vmatprep.mubr.f32.mxu0 0.0
    %1336 = vmatmul.mubr.f32.gmra.mrb[0].mxu0 %v1269
    %v1337 = vpop.f32.mrb[0].mxu0
    %v1338 = vadd.f32 %v1266, %v1337
    %v1339 = vpop.f32.mrb[0].mxu0
    %1340 = vdwg.mxu0
    %vm1341 = vcmask 25600
    %v1342 = vsel %vm1341, %v1338, -inf
    %1343 = vmax.xlane.f32.xlu0 %v1342
    %v1344 = vpop.xlane.xlu0 %1343
    %v1345 = vsub.f32 %v1338, %v1344
    %v1346 = vmul.f32 %v1345, 1.442695
    %v1347 = vpow.pop %v1346
    %v1348 = vsel %vm1341, %v1347, 0.0
    %1349 = vadd.xlane.f32.xlu0 %v1348
    %v1350 = vpop.xlane.xlu0 %1349
    %v1351 = vrcp.pop %v1350
    %v1352 = vmul.f32 %v1347, %v1351
    %1353 = vst.msk [vmem:[#allocation5] sm:$0x3] %vm1341, %v1352
    // Predicated region
    $region14: #{tpu_custom_call.1} parent=1 // pred_check
      _
    $region15: #{tpu_custom_call.1} parent=1 // pred_check_branch
      %1355 = sbr.rel (0) target = $region17
    $region16: #{tpu_custom_call.1} parent=1 // pred_region
      %s1357 = ssub.s32 32, 32
      %1358 = vsyncadd [#allocation4], %s1357
      %s1360 = sshll.u32 [#allocation5], 4
      %s1361 = int_to_ptr.vmem [resolvable:$true] %s1360
      %1363 = dma.vmem_to_hbm [thread:$0]  %s1361, 32, %s2, [#allocation4]
    $region17: #{tpu_custom_call.1} parent=1 // pred_fallthru
      _
    // Predicated region
    $region18: #{tpu_custom_call.1} parent=1 // pred_check
      _
    $region19: #{tpu_custom_call.1} parent=1 // pred_check_branch
      %1365 = sbr.rel (0) target = $region21
    $region20: #{tpu_custom_call.1} parent=1 // pred_region
      %1366 = dma.done [#allocation4], 32
    $region21: #{tpu_custom_call.1} parent=1 // pred_fallthru
      _
    %1367 = vsyncpa [#allocation3], 1
    %1368 = vsyncpa [#allocation4], 1

</llo_original>
